<compile_context>
chip_gen: v5e
topology: v5e:2x2
jax: 0.10.0
libtpu: 0.0.40
codegen_flags: <defaults>
</compile_context>

<pallas_src>
import functools

import jax
import jax.numpy as jnp
from jax.experimental import pallas as pl
from jax.experimental.pallas import tpu as pltpu


# ----------------------------- kernel helpers ------------------------------ #

def _pool_bias_store(acc, b_ref, o_ref, st_ref, *, tdc, h):
    """2x2x2 max-pool + bias + ReLU + lane-dense store + BN partial stats."""
    woc = acc.shape[-1] // 2
    tdo, ho = tdc // 2, h // 2
    # W-pool via the even/odd column halves, then H, then D (sublane reshapes).
    wmax = jnp.maximum(acc[:, :woc], acc[:, woc:])               # (tdc*h, woc)
    hmax = jnp.max(wmax.reshape(tdc, ho, 2, woc), axis=2)        # (tdc, ho, woc)
    dmax = jnp.max(hmax.reshape(tdo, 2, ho, woc), axis=1)        # (tdo, ho, woc)
    y = jnp.maximum(dmax + b_ref[...], 0.0)                      # bias+ReLU after pool

    # Lane-dense store: fold Ho into the lane axis (Ho*Wo*Cout wide, 128-mult).
    y2 = jnp.concatenate([y[:, i, :] for i in range(ho)], axis=-1)
    o_ref[0, 0] = y2.astype(o_ref.dtype)

    yf = y.reshape(tdo * ho, woc)
    s = jnp.sum(yf, axis=0, keepdims=True)                       # (1, woc)
    q = jnp.sum(yf * yf, axis=0, keepdims=True)
    st_ref[0, 0] = jnp.concatenate([s, q], axis=-1)              # (1, 2*woc)


# ----------------------------- kernels ------------------------------------- #

def _conv_pool_kernel(x_ref, w_ref, b_ref, o_ref, st_ref, *, tdc):
    """conv(3x3x3)+ReLU+MaxPool3d(2)+BN partial stats for one depth tile.

    x_ref : (1, D+2, H+2, (W+2)*Cin) f32, resident per batch element
    w_ref : (3, 3, (W+2)*Cin, W*Cout) bf16 pool-permuted banded weights
    b_ref : (1, Wo*Cout) f32 bias (pooled column layout)
    o_ref : (1, 1, TDo, Ho*Wo*Cout) f32
    st_ref: (1, 1, 1, 2*Wo*Cout) f32  [channel sums | channel sum-of-squares]
    """
    dt = pl.program_id(1)
    h = x_ref.shape[2] - 2
    k = x_ref.shape[-1]
    ncol = w_ref.shape[-1]
    d0 = dt * tdc

    acc = jnp.zeros((tdc * h, ncol), jnp.float32)
    for kd in range(3):
        for kh in range(3):
            lhs = x_ref[0, pl.ds(d0 + kd, tdc), pl.ds(kh, h), :]
            acc = acc + jnp.dot(lhs.reshape(tdc * h, k).astype(jnp.bfloat16),
                                w_ref[kd, kh],
                                preferred_element_type=jnp.float32)
    _pool_bias_store(acc, b_ref, o_ref, st_ref, tdc=tdc, h=h)


def _conv_conv_pool_kernel(x_ref, w1_ref, b1_ref, w2_ref, b2_ref,
                           o_ref, st_ref, c1_ref, *, tdc):
    """conv1+ReLU (into VMEM scratch, halo rows recomputed) -> conv2+ReLU ->
    MaxPool3d(2) -> BN partial stats, one depth tile.  No HBM intermediate.

    x_ref : (1, D+4, H+2, (W+2)*Cin) f32, resident per batch element
    w1_ref: (3, 3, (W+2)*Cin, (W+2)*Cout) bf16 banded weights, zero border cols
    b1_ref: (1, (W+2)*Cout) f32 bias, zero on border cols
    w2_ref: (3, 3, (W+2)*Cout, W*Cout) bf16 pool-permuted banded weights
    b2_ref: (1, Wo*Cout) f32 bias (pooled column layout)
    o_ref : (1, 1, TDo, Ho*Wo*Cout) f32
    st_ref: (1, 1, 1, 2*Wo*Cout) f32
    c1_ref: VMEM scratch (tdc+2, H+2, (W+2)*Cout) f32  (conv1 activations)
    """
    dt = pl.program_id(1)
    n_dt = pl.num_programs(1)
    h = x_ref.shape[2] - 2
    k1 = x_ref.shape[-1]
    ncol1 = w1_ref.shape[-1]
    ncol2 = w2_ref.shape[-1]
    td1 = tdc + 2                        # conv1 rows incl. 2 recomputed halos
    d0 = dt * tdc

    # ---- conv1 + bias + ReLU straight into the VMEM scratch ----
    acc1 = jnp.zeros((td1 * h, ncol1), jnp.float32)
    for kd in range(3):
        for kh in range(3):
            lhs = x_ref[0, pl.ds(d0 + kd, td1), pl.ds(kh, h), :]
            acc1 = acc1 + jnp.dot(lhs.reshape(td1 * h, k1).astype(jnp.bfloat16),
                                  w1_ref[kd, kh],
                                  preferred_element_type=jnp.float32)
    y1 = jnp.maximum(acc1 + b1_ref[...], 0.0).reshape(td1, h, ncol1)

    # H halo rows are conv2's zero padding (W halo columns are already zero
    # because the banded conv1 weights / bias have zero border columns).
    zrow = jnp.zeros((td1, 1, ncol1), c1_ref.dtype)
    c1_ref[:, pl.ds(0, 1), :] = zrow
    c1_ref[:, pl.ds(h + 1, 1), :] = zrow
    c1_ref[:, pl.ds(1, h), :] = y1.astype(c1_ref.dtype)

    # Depth rows outside the volume must be PyTorch's zero padding, not conv1
    # applied to out-of-range rows: overwrite the boundary halo planes.
    @pl.when(dt == 0)
    def _():
        c1_ref[pl.ds(0, 1), :, :] = jnp.zeros((1, h + 2, ncol1), c1_ref.dtype)

    @pl.when(dt == n_dt - 1)
    def _():
        c1_ref[pl.ds(td1 - 1, 1), :, :] = jnp.zeros((1, h + 2, ncol1),
                                                    c1_ref.dtype)

    # ---- conv2 + pool + bias + ReLU + stats ----
    acc2 = jnp.zeros((tdc * h, ncol2), jnp.float32)
    for kd in range(3):
        for kh in range(3):
            lhs = c1_ref[pl.ds(kd, tdc), pl.ds(kh, h), :]
            acc2 = acc2 + jnp.dot(lhs.reshape(tdc * h, ncol1).astype(jnp.bfloat16),
                                  w2_ref[kd, kh],
                                  preferred_element_type=jnp.float32)
    _pool_bias_store(acc2, b2_ref, o_ref, st_ref, tdc=tdc, h=h)


# ----------------------------- wrapper helpers ------------------------------ #

def _banded_weight(w_dhwio, W, *, pool_permute, pad_w_cols):
    """Fold the kw taps + W dimension into one (K, N) MXU weight per (kd, kh).

    Returns (3, 3, (W+2)*Cin, Ncol) where Ncol is W*Cout (pool_permute: even-w
    columns first, odd-w second) or (W+2)*Cout (pad_w_cols: zero columns for
    the W halo so the conv output comes out already W-padded).
    """
    _, _, kw_taps, cin, cout = w_dhwio.shape
    Wp = W + 2
    if pool_permute:
        Wo = W // 2
        w_of_col = jnp.concatenate([2 * jnp.arange(Wo), 2 * jnp.arange(Wo) + 1])
    else:
        w_of_col = jnp.arange(W)
    wi = jnp.arange(Wp)[None, :, None]                     # (1, Wp, 1)
    kw = jnp.arange(kw_taps)[:, None, None]                # (3, 1, 1)
    wc = w_of_col[None, None, :]                           # (1, 1, W)
    band = (wi == (wc + kw)).astype(w_dhwio.dtype)         # (3, Wp, W)
    wb = jnp.einsum("kab,dekio->deaibo", band, w_dhwio)    # (3,3,Wp,Ci,W,Co)
    wb = wb.reshape(3, 3, Wp * cin, W * cout)
    if pad_w_cols:
        wb = jnp.pad(wb, ((0, 0), (0, 0), (0, 0), (cout, cout)))
    return wb


def _pick_depth_tile(d, h):
    """Largest even tile dividing d with tile*h <= 128 (MXU-safe on all gens)."""
    best = 2
    for cand in range(2, d + 1, 2):
        if d % cand == 0 and cand * h <= 128:
            best = cand
    return best


def _vmem_limit(block_bytes, scratch_bytes=0):
    """Scoped VMEM: double-buffered blocks + scratch + headroom, capped."""
    need = 2 * block_bytes + scratch_bytes + (16 << 20)
    return int(min(max(need, 32 << 20), 96 << 20))


# ----------------------------- public wrapper ------------------------------ #

def conv3d_block(x_ncdhw, params, *, double=False, eps=1e-5):
    """Forward pass of Conv3DBlock.  Input/output in PyTorch NCDHW layout."""
    x = jnp.transpose(x_ncdhw, (0, 2, 3, 4, 1)).astype(jnp.float32)   # NDHWC
    N, D, H, W, Cin = x.shape
    Cout = params["w1"].shape[-1]
    assert D % 2 == 0 and H % 2 == 0 and W % 2 == 0, "pool path assumes even dims"

    tdc = _pick_depth_tile(D, H)
    nDT = D // tdc
    Do, Ho, Wo = D // 2, H // 2, W // 2
    TDo = tdc // 2
    WoC = Wo * Cout
    LaneO = Ho * WoC                                   # lane-dense output width

    dpad = 2 if double else 1                          # double needs 2-deep halo
    # TODO(synk): zero-padding the network input is one wrapper-side jnp.pad;
    # in-kernel halo masking would avoid materializing it in HBM.
    xp = jnp.pad(x, ((0, 0), (dpad, dpad), (1, 1), (1, 1), (0, 0)))
    xp = xp.reshape(N, D + 2 * dpad, H + 2, (W + 2) * Cin)

    kin = (W + 2) * Cin
    ncol2 = W * Cout
    w_last = params["w2"] if double else params["w1"]
    b_last = params["b2"] if double else params["b1"]
    wpool = _banded_weight(w_last, W, pool_permute=True,
                           pad_w_cols=False).astype(jnp.bfloat16)
    bpool = jnp.tile(b_last, Wo).reshape(1, WoC).astype(jnp.float32)

    out_shapes = (
        jax.ShapeDtypeStruct((N, nDT, TDo, LaneO), jnp.float32),
        jax.ShapeDtypeStruct((N, nDT, 1, 2 * WoC), jnp.float32),
    )
    out_specs = (
        pl.BlockSpec((1, 1, TDo, LaneO), lambda n, d: (n, d, 0, 0)),
        pl.BlockSpec((1, 1, 1, 2 * WoC), lambda n, d: (n, d, 0, 0)),
    )
    x_spec = pl.BlockSpec((1, D + 2 * dpad, H + 2, kin), lambda n, d: (n, 0, 0, 0))
    out_bytes = TDo * LaneO * 4 + 2 * WoC * 4

    if double:
        ncol1 = (W + 2) * Cout
        w1b = _banded_weight(params["w1"], W, pool_permute=False,
                             pad_w_cols=True).astype(jnp.bfloat16)
        b1row = jnp.pad(jnp.tile(params["b1"], W),
                        (Cout, Cout)).reshape(1, ncol1).astype(jnp.float32)
        block_bytes = ((D + 4) * (H + 2) * kin * 4            # x (f32)
                       + 9 * kin * ncol1 * 2                  # w1 (bf16)
                       + 9 * ncol1 * ncol2 * 2                # w2 (bf16)
                       + (ncol1 + WoC) * 4 + out_bytes)
        scratch_bytes = (tdc + 2) * (H + 2) * ncol1 * 4
        fwd = pl.pallas_call(
            functools.partial(_conv_conv_pool_kernel, tdc=tdc),
            out_shape=out_shapes,
            grid=(N, nDT),
            in_specs=[
                x_spec,
                pl.BlockSpec((3, 3, kin, ncol1), lambda n, d: (0, 0, 0, 0)),
                pl.BlockSpec((1, ncol1), lambda n, d: (0, 0)),
                pl.BlockSpec((3, 3, ncol1, ncol2), lambda n, d: (0, 0, 0, 0)),
                pl.BlockSpec((1, WoC), lambda n, d: (0, 0)),
            ],
            out_specs=out_specs,
            scratch_shapes=[pltpu.VMEM((tdc + 2, H + 2, ncol1), jnp.float32)],
            compiler_params=pltpu.CompilerParams(
                dimension_semantics=("parallel", "parallel"),
                vmem_limit_bytes=_vmem_limit(block_bytes, scratch_bytes)),
        )
        pooled, stats = fwd(xp, w1b, b1row, wpool, bpool)
    else:
        block_bytes = ((D + 2) * (H + 2) * kin * 4
                       + 9 * kin * ncol2 * 2 + WoC * 4 + out_bytes)
        fwd = pl.pallas_call(
            functools.partial(_conv_pool_kernel, tdc=tdc),
            out_shape=out_shapes,
            grid=(N, nDT),
            in_specs=[
                x_spec,
                pl.BlockSpec((3, 3, kin, ncol2), lambda n, d: (0, 0, 0, 0)),
                pl.BlockSpec((1, WoC), lambda n, d: (0, 0)),
            ],
            out_specs=out_specs,
            compiler_params=pltpu.CompilerParams(
                dimension_semantics=("parallel", "parallel"),
                vmem_limit_bytes=_vmem_limit(block_bytes)),
        )
        pooled, stats = fwd(xp, wpool, bpool)

    # BatchNorm3d finalize (training-mode batch stats, biased variance).
    # TODO(synk): running_mean/running_var buffer update (training side effect)
    # is not modeled; it does not affect the forward output.
    cnt = N * Do * Ho * Wo
    sum_c = jnp.sum(stats[..., :WoC].reshape(N, nDT, Wo, Cout), axis=(0, 1, 2))
    ssq_c = jnp.sum(stats[..., WoC:].reshape(N, nDT, Wo, Cout), axis=(0, 1, 2))
    mean = sum_c / cnt
    var = jnp.maximum(ssq_c / cnt - mean * mean, 0.0)
    scale = params["gamma"] * jax.lax.rsqrt(var + eps)
    shift = params["beta"] - mean * scale
    # Per-channel affine left to XLA: it fuses into the NCDHW transpose copy.
    out = pooled.reshape(N, Do, Ho, Wo, Cout) * scale + shift
    return jnp.transpose(out, (0, 4, 1, 2, 3))                        # NCDHW


# ----------------------------- reference (pure JAX) ------------------------ #

def conv3d_block_ref(x_ncdhw, params, *, double=False, eps=1e-5, mxu_bf16=True):
    """Reference; mxu_bf16=True emulates the bf16-input / f32-accum MXU path."""
    x = jnp.transpose(x_ncdhw, (0, 2, 3, 4, 1)).astype(jnp.float32)
    cast = (lambda a: a.astype(jnp.bfloat16)) if mxu_bf16 else (lambda a: a)

    def conv(z, w, b):
        y = jax.lax.conv_general_dilated(
            cast(z), cast(w), window_strides=(1, 1, 1), padding="SAME",
            dimension_numbers=("NDHWC", "DHWIO", "NDHWC"),
            preferred_element_type=jnp.float32)
        return jnp.maximum(y + b, 0.0)

    y = conv(x, params["w1"], params["b1"])
    if double:
        y = conv(y, params["w2"], params["b2"])
    p = jax.lax.reduce_window(y, -jnp.inf, jax.lax.max,
                              (1, 2, 2, 2, 1), (1, 2, 2, 2, 1), "VALID")
    mean = jnp.mean(p, axis=(0, 1, 2, 3), keepdims=True)
    var = jnp.mean((p - mean) ** 2, axis=(0, 1, 2, 3), keepdims=True)
    out = (p - mean) * jax.lax.rsqrt(var + eps) * params["gamma"] + params["beta"]
    return jnp.transpose(out, (0, 4, 1, 2, 3))


# ----------------------------- main ---------------------------------------- #

if __name__ == "__main__":
    N, Cin, Cout = 2, 4, 8
    D = H = W = 16

    key = jax.random.PRNGKey(0)
    k_x, k_w1, k_b1, k_w2, k_b2 = jax.random.split(key, 5)

    x = jax.random.normal(k_x, (N, Cin, D, H, W), jnp.float32)  # PyTorch NCDHW

    params = {
        "w1": 0.2 * jax.random.normal(k_w1, (3, 3, 3, Cin, Cout), jnp.float32),
        "b1": 0.1 * jax.random.normal(k_b1, (Cout,), jnp.float32),
        "w2": 0.2 * jax.random.normal(k_w2, (3, 3, 3, Cout, Cout), jnp.float32),
        "b2": 0.1 * jax.random.normal(k_b2, (Cout,), jnp.float32),
        "gamma": jnp.ones((Cout,), jnp.float32),   # BatchNorm3d default init
        "beta": jnp.zeros((Cout,), jnp.float32),
    }

    for double in (False, True):
        fwd = jax.jit(functools.partial(conv3d_block, double=double))
        out = jax.block_until_ready(fwd(x, params))
        # Reference emulates the same bf16-input / f32-accumulate MXU numerics.
        ref = jax.block_until_ready(
            conv3d_block_ref(x, params, double=double, mxu_bf16=True))
        assert out.shape == (N, Cout, D // 2, H // 2, W // 2), out.shape
        err = float(jnp.max(jnp.abs(out - ref)))
        assert err < 2e-3, f"mismatch (double={double}): max abs err {err}"

    print("KERNEL_OK")
</pallas_src>

<mosaic_0001>
module attributes {stable_mosaic.version = 11 : i64} {
  func.func @_conv_pool_kernel(%arg0: i32, %arg1: i32, %arg2: memref<1x18x18x72xf32, #tpu.memory_space<vmem>>, %arg3: memref<3x3x72x128xbf16, #tpu.memory_space<vmem>>, %arg4: memref<1x64xf32, #tpu.memory_space<vmem>>, %arg5: memref<1x1x4x512xf32, #tpu.memory_space<vmem>>, %arg6: memref<1x1x1x128xf32, #tpu.memory_space<vmem>>) attributes {dimension_semantics = [#tpu.dimension_semantics<parallel>, #tpu.dimension_semantics<parallel>], iteration_bounds = array<i64: 2, 2>, scalar_prefetch = 0 : i64, scratch_operands = 0 : i64, tpu.core_type = #tpu.core_type<tc>, window_params = [{transform_indices = @transform_0, window_bounds = array<i64: 1, 18, 18, 72>}, {pipeline_mode = #tpu.pipeline_mode<synchronous>, transform_indices = @transform_1, window_bounds = array<i64: 3, 3, 72, 128>}, {pipeline_mode = #tpu.pipeline_mode<synchronous>, transform_indices = @transform_2, window_bounds = array<i64: 1, 64>}, {transform_indices = @transform_3, window_bounds = array<i64: 1, 1, 4, 512>}, {transform_indices = @transform_4, window_bounds = array<i64: 1, 1, 1, 128>}]} {
    %c8_i32 = arith.constant 8 : i32
    %0 = arith.muli %arg1, %c8_i32 : i32
    %cst = arith.constant 0.000000e+00 : f32
    %1 = vector.broadcast %cst : f32 to vector<128x128xf32>
    %c0_i32 = arith.constant 0 : i32
    %2 = arith.addi %0, %c0_i32 : i32
    %c0 = arith.constant 0 : index
    %3 = arith.index_cast %2 : i32 to index
    %c0_0 = arith.constant 0 : index
    %c0_1 = arith.constant 0 : index
    %4 = vector.load %arg2[%c0, %3, %c0_0, %c0_1] : memref<1x18x18x72xf32, #tpu.memory_space<vmem>>, vector<1x8x16x72xf32>
    %5 = vector.shape_cast %4 : vector<1x8x16x72xf32> to vector<8x16x72xf32>
    %6 = vector.shape_cast %5 : vector<8x16x72xf32> to vector<128x72xf32>
    %7 = arith.truncf %6 : vector<128x72xf32> to vector<128x72xbf16>
    %c0_2 = arith.constant 0 : index
    %c0_3 = arith.constant 0 : index
    %c0_4 = arith.constant 0 : index
    %c0_5 = arith.constant 0 : index
    %8 = vector.load %arg3[%c0_2, %c0_3, %c0_4, %c0_5] : memref<3x3x72x128xbf16, #tpu.memory_space<vmem>>, vector<1x1x72x128xbf16>
    %9 = vector.shape_cast %8 : vector<1x1x72x128xbf16> to vector<72x128xbf16>
    %cst_6 = arith.constant dense<0.000000e+00> : vector<128x128xf32>
    %10 = tpu.matmul %7, %9, %cst_6 {dimension_numbers = #tpu.dot_dimension_numbers<[1], [0], [0], [1], [0, 0, 1, 1], [], []>} : vector<128x72xbf16>, vector<72x128xbf16>, vector<128x128xf32> -> vector<128x128xf32>
    %11 = arith.addf %1, %10 : vector<128x128xf32>
    %c0_i32_7 = arith.constant 0 : i32
    %12 = arith.addi %0, %c0_i32_7 : i32
    %c0_8 = arith.constant 0 : index
    %13 = arith.index_cast %12 : i32 to index
    %c1 = arith.constant 1 : index
    %c0_9 = arith.constant 0 : index
    %14 = vector.load %arg2[%c0_8, %13, %c1, %c0_9] : memref<1x18x18x72xf32, #tpu.memory_space<vmem>>, vector<1x8x16x72xf32>
    %15 = vector.shape_cast %14 : vector<1x8x16x72xf32> to vector<8x16x72xf32>
    %16 = vector.shape_cast %15 : vector<8x16x72xf32> to vector<128x72xf32>
    %17 = arith.truncf %16 : vector<128x72xf32> to vector<128x72xbf16>
    %c0_10 = arith.constant 0 : index
    %c1_11 = arith.constant 1 : index
    %c0_12 = arith.constant 0 : index
    %c0_13 = arith.constant 0 : index
    %18 = vector.load %arg3[%c0_10, %c1_11, %c0_12, %c0_13] : memref<3x3x72x128xbf16, #tpu.memory_space<vmem>>, vector<1x1x72x128xbf16>
    %19 = vector.shape_cast %18 : vector<1x1x72x128xbf16> to vector<72x128xbf16>
    %cst_14 = arith.constant dense<0.000000e+00> : vector<128x128xf32>
    %20 = tpu.matmul %17, %19, %cst_14 {dimension_numbers = #tpu.dot_dimension_numbers<[1], [0], [0], [1], [0, 0, 1, 1], [], []>} : vector<128x72xbf16>, vector<72x128xbf16>, vector<128x128xf32> -> vector<128x128xf32>
    %21 = arith.addf %11, %20 : vector<128x128xf32>
    %c0_i32_15 = arith.constant 0 : i32
    %22 = arith.addi %0, %c0_i32_15 : i32
    %c0_16 = arith.constant 0 : index
    %23 = arith.index_cast %22 : i32 to index
    %c2 = arith.constant 2 : index
    %c0_17 = arith.constant 0 : index
    %24 = vector.load %arg2[%c0_16, %23, %c2, %c0_17] : memref<1x18x18x72xf32, #tpu.memory_space<vmem>>, vector<1x8x16x72xf32>
    %25 = vector.shape_cast %24 : vector<1x8x16x72xf32> to vector<8x16x72xf32>
    %26 = vector.shape_cast %25 : vector<8x16x72xf32> to vector<128x72xf32>
    %27 = arith.truncf %26 : vector<128x72xf32> to vector<128x72xbf16>
    %c0_18 = arith.constant 0 : index
    %c2_19 = arith.constant 2 : index
    %c0_20 = arith.constant 0 : index
    %c0_21 = arith.constant 0 : index
    %28 = vector.load %arg3[%c0_18, %c2_19, %c0_20, %c0_21] : memref<3x3x72x128xbf16, #tpu.memory_space<vmem>>, vector<1x1x72x128xbf16>
    %29 = vector.shape_cast %28 : vector<1x1x72x128xbf16> to vector<72x128xbf16>
    %cst_22 = arith.constant dense<0.000000e+00> : vector<128x128xf32>
    %30 = tpu.matmul %27, %29, %cst_22 {dimension_numbers = #tpu.dot_dimension_numbers<[1], [0], [0], [1], [0, 0, 1, 1], [], []>} : vector<128x72xbf16>, vector<72x128xbf16>, vector<128x128xf32> -> vector<128x128xf32>
    %31 = arith.addf %21, %30 : vector<128x128xf32>
    %c1_i32 = arith.constant 1 : i32
    %32 = arith.addi %0, %c1_i32 : i32
    %c0_23 = arith.constant 0 : index
    %33 = arith.index_cast %32 : i32 to index
    %c0_24 = arith.constant 0 : index
    %c0_25 = arith.constant 0 : index
    %34 = vector.load %arg2[%c0_23, %33, %c0_24, %c0_25] : memref<1x18x18x72xf32, #tpu.memory_space<vmem>>, vector<1x8x16x72xf32>
    %35 = vector.shape_cast %34 : vector<1x8x16x72xf32> to vector<8x16x72xf32>
    %36 = vector.shape_cast %35 : vector<8x16x72xf32> to vector<128x72xf32>
    %37 = arith.truncf %36 : vector<128x72xf32> to vector<128x72xbf16>
    %c1_26 = arith.constant 1 : index
    %c0_27 = arith.constant 0 : index
    %c0_28 = arith.constant 0 : index
    %c0_29 = arith.constant 0 : index
    %38 = vector.load %arg3[%c1_26, %c0_27, %c0_28, %c0_29] : memref<3x3x72x128xbf16, #tpu.memory_space<vmem>>, vector<1x1x72x128xbf16>
    %39 = vector.shape_cast %38 : vector<1x1x72x128xbf16> to vector<72x128xbf16>
    %cst_30 = arith.constant dense<0.000000e+00> : vector<128x128xf32>
    %40 = tpu.matmul %37, %39, %cst_30 {dimension_numbers = #tpu.dot_dimension_numbers<[1], [0], [0], [1], [0, 0, 1, 1], [], []>} : vector<128x72xbf16>, vector<72x128xbf16>, vector<128x128xf32> -> vector<128x128xf32>
    %41 = arith.addf %31, %40 : vector<128x128xf32>
    %c1_i32_31 = arith.constant 1 : i32
    %42 = arith.addi %0, %c1_i32_31 : i32
    %c0_32 = arith.constant 0 : index
    %43 = arith.index_cast %42 : i32 to index
    %c1_33 = arith.constant 1 : index
    %c0_34 = arith.constant 0 : index
    %44 = vector.load %arg2[%c0_32, %43, %c1_33, %c0_34] : memref<1x18x18x72xf32, #tpu.memory_space<vmem>>, vector<1x8x16x72xf32>
    %45 = vector.shape_cast %44 : vector<1x8x16x72xf32> to vector<8x16x72xf32>
    %46 = vector.shape_cast %45 : vector<8x16x72xf32> to vector<128x72xf32>
    %47 = arith.truncf %46 : vector<128x72xf32> to vector<128x72xbf16>
    %c1_35 = arith.constant 1 : index
    %c1_36 = arith.constant 1 : index
    %c0_37 = arith.constant 0 : index
    %c0_38 = arith.constant 0 : index
    %48 = vector.load %arg3[%c1_35, %c1_36, %c0_37, %c0_38] : memref<3x3x72x128xbf16, #tpu.memory_space<vmem>>, vector<1x1x72x128xbf16>
    %49 = vector.shape_cast %48 : vector<1x1x72x128xbf16> to vector<72x128xbf16>
    %cst_39 = arith.constant dense<0.000000e+00> : vector<128x128xf32>
    %50 = tpu.matmul %47, %49, %cst_39 {dimension_numbers = #tpu.dot_dimension_numbers<[1], [0], [0], [1], [0, 0, 1, 1], [], []>} : vector<128x72xbf16>, vector<72x128xbf16>, vector<128x128xf32> -> vector<128x128xf32>
    %51 = arith.addf %41, %50 : vector<128x128xf32>
    %c1_i32_40 = arith.constant 1 : i32
    %52 = arith.addi %0, %c1_i32_40 : i32
    %c0_41 = arith.constant 0 : index
    %53 = arith.index_cast %52 : i32 to index
    %c2_42 = arith.constant 2 : index
    %c0_43 = arith.constant 0 : index
    %54 = vector.load %arg2[%c0_41, %53, %c2_42, %c0_43] : memref<1x18x18x72xf32, #tpu.memory_space<vmem>>, vector<1x8x16x72xf32>
    %55 = vector.shape_cast %54 : vector<1x8x16x72xf32> to vector<8x16x72xf32>
    %56 = vector.shape_cast %55 : vector<8x16x72xf32> to vector<128x72xf32>
    %57 = arith.truncf %56 : vector<128x72xf32> to vector<128x72xbf16>
    %c1_44 = arith.constant 1 : index
    %c2_45 = arith.constant 2 : index
    %c0_46 = arith.constant 0 : index
    %c0_47 = arith.constant 0 : index
    %58 = vector.load %arg3[%c1_44, %c2_45, %c0_46, %c0_47] : memref<3x3x72x128xbf16, #tpu.memory_space<vmem>>, vector<1x1x72x128xbf16>
    %59 = vector.shape_cast %58 : vector<1x1x72x128xbf16> to vector<72x128xbf16>
    %cst_48 = arith.constant dense<0.000000e+00> : vector<128x128xf32>
    %60 = tpu.matmul %57, %59, %cst_48 {dimension_numbers = #tpu.dot_dimension_numbers<[1], [0], [0], [1], [0, 0, 1, 1], [], []>} : vector<128x72xbf16>, vector<72x128xbf16>, vector<128x128xf32> -> vector<128x128xf32>
    %61 = arith.addf %51, %60 : vector<128x128xf32>
    %c2_i32 = arith.constant 2 : i32
    %62 = arith.addi %0, %c2_i32 : i32
    %c0_49 = arith.constant 0 : index
    %63 = arith.index_cast %62 : i32 to index
    %c0_50 = arith.constant 0 : index
    %c0_51 = arith.constant 0 : index
    %64 = vector.load %arg2[%c0_49, %63, %c0_50, %c0_51] : memref<1x18x18x72xf32, #tpu.memory_space<vmem>>, vector<1x8x16x72xf32>
    %65 = vector.shape_cast %64 : vector<1x8x16x72xf32> to vector<8x16x72xf32>
    %66 = vector.shape_cast %65 : vector<8x16x72xf32> to vector<128x72xf32>
    %67 = arith.truncf %66 : vector<128x72xf32> to vector<128x72xbf16>
    %c2_52 = arith.constant 2 : index
    %c0_53 = arith.constant 0 : index
    %c0_54 = arith.constant 0 : index
    %c0_55 = arith.constant 0 : index
    %68 = vector.load %arg3[%c2_52, %c0_53, %c0_54, %c0_55] : memref<3x3x72x128xbf16, #tpu.memory_space<vmem>>, vector<1x1x72x128xbf16>
    %69 = vector.shape_cast %68 : vector<1x1x72x128xbf16> to vector<72x128xbf16>
    %cst_56 = arith.constant dense<0.000000e+00> : vector<128x128xf32>
    %70 = tpu.matmul %67, %69, %cst_56 {dimension_numbers = #tpu.dot_dimension_numbers<[1], [0], [0], [1], [0, 0, 1, 1], [], []>} : vector<128x72xbf16>, vector<72x128xbf16>, vector<128x128xf32> -> vector<128x128xf32>
    %71 = arith.addf %61, %70 : vector<128x128xf32>
    %c2_i32_57 = arith.constant 2 : i32
    %72 = arith.addi %0, %c2_i32_57 : i32
    %c0_58 = arith.constant 0 : index
    %73 = arith.index_cast %72 : i32 to index
    %c1_59 = arith.constant 1 : index
    %c0_60 = arith.constant 0 : index
    %74 = vector.load %arg2[%c0_58, %73, %c1_59, %c0_60] : memref<1x18x18x72xf32, #tpu.memory_space<vmem>>, vector<1x8x16x72xf32>
    %75 = vector.shape_cast %74 : vector<1x8x16x72xf32> to vector<8x16x72xf32>
    %76 = vector.shape_cast %75 : vector<8x16x72xf32> to vector<128x72xf32>
    %77 = arith.truncf %76 : vector<128x72xf32> to vector<128x72xbf16>
    %c2_61 = arith.constant 2 : index
    %c1_62 = arith.constant 1 : index
    %c0_63 = arith.constant 0 : index
    %c0_64 = arith.constant 0 : index
    %78 = vector.load %arg3[%c2_61, %c1_62, %c0_63, %c0_64] : memref<3x3x72x128xbf16, #tpu.memory_space<vmem>>, vector<1x1x72x128xbf16>
    %79 = vector.shape_cast %78 : vector<1x1x72x128xbf16> to vector<72x128xbf16>
    %cst_65 = arith.constant dense<0.000000e+00> : vector<128x128xf32>
    %80 = tpu.matmul %77, %79, %cst_65 {dimension_numbers = #tpu.dot_dimension_numbers<[1], [0], [0], [1], [0, 0, 1, 1], [], []>} : vector<128x72xbf16>, vector<72x128xbf16>, vector<128x128xf32> -> vector<128x128xf32>
    %81 = arith.addf %71, %80 : vector<128x128xf32>
    %c2_i32_66 = arith.constant 2 : i32
    %82 = arith.addi %0, %c2_i32_66 : i32
    %c0_67 = arith.constant 0 : index
    %83 = arith.index_cast %82 : i32 to index
    %c2_68 = arith.constant 2 : index
    %c0_69 = arith.constant 0 : index
    %84 = vector.load %arg2[%c0_67, %83, %c2_68, %c0_69] : memref<1x18x18x72xf32, #tpu.memory_space<vmem>>, vector<1x8x16x72xf32>
    %85 = vector.shape_cast %84 : vector<1x8x16x72xf32> to vector<8x16x72xf32>
    %86 = vector.shape_cast %85 : vector<8x16x72xf32> to vector<128x72xf32>
    %87 = arith.truncf %86 : vector<128x72xf32> to vector<128x72xbf16>
    %c2_70 = arith.constant 2 : index
    %c2_71 = arith.constant 2 : index
    %c0_72 = arith.constant 0 : index
    %c0_73 = arith.constant 0 : index
    %88 = vector.load %arg3[%c2_70, %c2_71, %c0_72, %c0_73] : memref<3x3x72x128xbf16, #tpu.memory_space<vmem>>, vector<1x1x72x128xbf16>
    %89 = vector.shape_cast %88 : vector<1x1x72x128xbf16> to vector<72x128xbf16>
    %cst_74 = arith.constant dense<0.000000e+00> : vector<128x128xf32>
    %90 = tpu.matmul %87, %89, %cst_74 {dimension_numbers = #tpu.dot_dimension_numbers<[1], [0], [0], [1], [0, 0, 1, 1], [], []>} : vector<128x72xbf16>, vector<72x128xbf16>, vector<128x128xf32> -> vector<128x128xf32>
    %91 = arith.addf %81, %90 : vector<128x128xf32>
    %92 = vector.extract_strided_slice %91 {offsets = [0, 0], sizes = [128, 64], strides = [1, 1]} : vector<128x128xf32> to vector<128x64xf32>
    %93 = vector.extract_strided_slice %91 {offsets = [0, 64], sizes = [128, 64], strides = [1, 1]} : vector<128x128xf32> to vector<128x64xf32>
    %94 = arith.maximumf %92, %93 : vector<128x64xf32>
    %95 = vector.shape_cast %94 : vector<128x64xf32> to vector<8x8x2x64xf32>
    %cst_75 = arith.constant dense<0xFF800000> : vector<8x8x64xf32>
    %96 = vector.multi_reduction <maximumf>, %95, %cst_75 [2] : vector<8x8x2x64xf32> to vector<8x8x64xf32>
    %97 = vector.shape_cast %96 : vector<8x8x64xf32> to vector<4x2x8x64xf32>
    %cst_76 = arith.constant dense<0xFF800000> : vector<4x8x64xf32>
    %98 = vector.multi_reduction <maximumf>, %97, %cst_76 [1] : vector<4x2x8x64xf32> to vector<4x8x64xf32>
    %c0_77 = arith.constant 0 : index
    %c0_78 = arith.constant 0 : index
    %99 = vector.load %arg4[%c0_77, %c0_78] : memref<1x64xf32, #tpu.memory_space<vmem>>, vector<1x64xf32>
    %100 = vector.shape_cast %99 : vector<1x64xf32> to vector<1x1x64xf32>
    %101 = vector.broadcast %100 : vector<1x1x64xf32> to vector<4x8x64xf32>
    %102 = arith.addf %98, %101 : vector<4x8x64xf32>
    %cst_79 = arith.constant 0.000000e+00 : f32
    %103 = vector.broadcast %cst_79 : f32 to vector<4x8x64xf32>
    %104 = arith.maximumf %102, %103 : vector<4x8x64xf32>
    %105 = vector.extract_strided_slice %104 {offsets = [0, 0, 0], sizes = [4, 1, 64], strides = [1, 1, 1]} : vector<4x8x64xf32> to vector<4x1x64xf32>
    %106 = vector.shape_cast %105 : vector<4x1x64xf32> to vector<4x64xf32>
    %107 = vector.extract_strided_slice %104 {offsets = [0, 1, 0], sizes = [4, 1, 64], strides = [1, 1, 1]} : vector<4x8x64xf32> to vector<4x1x64xf32>
    %108 = vector.shape_cast %107 : vector<4x1x64xf32> to vector<4x64xf32>
    %109 = vector.extract_strided_slice %104 {offsets = [0, 2, 0], sizes = [4, 1, 64], strides = [1, 1, 1]} : vector<4x8x64xf32> to vector<4x1x64xf32>
    %110 = vector.shape_cast %109 : vector<4x1x64xf32> to vector<4x64xf32>
    %111 = vector.extract_strided_slice %104 {offsets = [0, 3, 0], sizes = [4, 1, 64], strides = [1, 1, 1]} : vector<4x8x64xf32> to vector<4x1x64xf32>
    %112 = vector.shape_cast %111 : vector<4x1x64xf32> to vector<4x64xf32>
    %113 = vector.extract_strided_slice %104 {offsets = [0, 4, 0], sizes = [4, 1, 64], strides = [1, 1, 1]} : vector<4x8x64xf32> to vector<4x1x64xf32>
    %114 = vector.shape_cast %113 : vector<4x1x64xf32> to vector<4x64xf32>
    %115 = vector.extract_strided_slice %104 {offsets = [0, 5, 0], sizes = [4, 1, 64], strides = [1, 1, 1]} : vector<4x8x64xf32> to vector<4x1x64xf32>
    %116 = vector.shape_cast %115 : vector<4x1x64xf32> to vector<4x64xf32>
    %117 = vector.extract_strided_slice %104 {offsets = [0, 6, 0], sizes = [4, 1, 64], strides = [1, 1, 1]} : vector<4x8x64xf32> to vector<4x1x64xf32>
    %118 = vector.shape_cast %117 : vector<4x1x64xf32> to vector<4x64xf32>
    %119 = vector.extract_strided_slice %104 {offsets = [0, 7, 0], sizes = [4, 1, 64], strides = [1, 1, 1]} : vector<4x8x64xf32> to vector<4x1x64xf32>
    %120 = vector.shape_cast %119 : vector<4x1x64xf32> to vector<4x64xf32>
    %121 = tpu.concatenate %106, %108, %110, %112, %114, %116, %118, %120 in 1 : vector<4x64xf32>, vector<4x64xf32>, vector<4x64xf32>, vector<4x64xf32>, vector<4x64xf32>, vector<4x64xf32>, vector<4x64xf32>, vector<4x64xf32> -> vector<4x512xf32>
    %c0_80 = arith.constant 0 : index
    %c0_81 = arith.constant 0 : index
    %c0_82 = arith.constant 0 : index
    %c0_83 = arith.constant 0 : index
    %122 = vector.load %arg5[%c0_80, %c0_81, %c0_82, %c0_83] : memref<1x1x4x512xf32, #tpu.memory_space<vmem>>, vector<1x1x4x512xf32>
    %123 = vector.shape_cast %122 : vector<1x1x4x512xf32> to vector<4x512xf32>
    %124 = vector.shape_cast %121 : vector<4x512xf32> to vector<1x1x4x512xf32>
    tpu.vector_store %arg5[%c0_80, %c0_81, %c0_82, %c0_83], %124 {strides = array<i32>} : memref<1x1x4x512xf32, #tpu.memory_space<vmem>>, vector<1x1x4x512xf32>,
    %125 = vector.shape_cast %104 : vector<4x8x64xf32> to vector<32x64xf32>
    %cst_84 = arith.constant dense<0.000000e+00> : vector<64xf32>
    %126 = vector.multi_reduction <add>, %125, %cst_84 [0] : vector<32x64xf32> to vector<64xf32>
    %127 = vector.shape_cast %126 : vector<64xf32> to vector<1x64xf32>
    %128 = arith.mulf %125, %125 : vector<32x64xf32>
    %cst_85 = arith.constant dense<0.000000e+00> : vector<64xf32>
    %129 = vector.multi_reduction <add>, %128, %cst_85 [0] : vector<32x64xf32> to vector<64xf32>
    %130 = vector.shape_cast %129 : vector<64xf32> to vector<1x64xf32>
    %131 = tpu.concatenate %127, %130 in 1 : vector<1x64xf32>, vector<1x64xf32> -> vector<1x128xf32>
    %c0_86 = arith.constant 0 : index
    %c0_87 = arith.constant 0 : index
    %c0_88 = arith.constant 0 : index
    %c0_89 = arith.constant 0 : index
    %132 = vector.load %arg6[%c0_86, %c0_87, %c0_88, %c0_89] : memref<1x1x1x128xf32, #tpu.memory_space<vmem>>, vector<1x1x1x128xf32>
    %133 = vector.shape_cast %132 : vector<1x1x1x128xf32> to vector<1x128xf32>
    %134 = vector.shape_cast %131 : vector<1x128xf32> to vector<1x1x1x128xf32>
    tpu.vector_store %arg6[%c0_86, %c0_87, %c0_88, %c0_89], %134 {strides = array<i32>} : memref<1x1x1x128xf32, #tpu.memory_space<vmem>>, vector<1x1x1x128xf32>,
    return
  }
  func.func @transform_0(%arg0: i32, %arg1: i32) -> (i32, i32, i32, i32) {
    %c0_i32 = arith.constant 0 : i32
    %c0_i32_0 = arith.constant 0 : i32
    %c0_i32_1 = arith.constant 0 : i32
    %c0_i32_2 = arith.constant 0 : i32
    return %arg0, %c0_i32, %c0_i32_0, %c0_i32_1 : i32, i32, i32, i32
  }
  func.func @transform_1(%arg0: i32, %arg1: i32) -> (i32, i32, i32, i32) {
    %c0_i32 = arith.constant 0 : i32
    %c0_i32_0 = arith.constant 0 : i32
    %c0_i32_1 = arith.constant 0 : i32
    %c0_i32_2 = arith.constant 0 : i32
    %c0_i32_3 = arith.constant 0 : i32
    return %c0_i32, %c0_i32_0, %c0_i32_1, %c0_i32_2 : i32, i32, i32, i32
  }
  func.func @transform_2(%arg0: i32, %arg1: i32) -> (i32, i32) {
    %c0_i32 = arith.constant 0 : i32
    %c0_i32_0 = arith.constant 0 : i32
    %c0_i32_1 = arith.constant 0 : i32
    return %c0_i32, %c0_i32_0 : i32, i32
  }
  func.func @transform_3(%arg0: i32, %arg1: i32) -> (i32, i32, i32, i32) {
    %c0_i32 = arith.constant 0 : i32
    %c0_i32_0 = arith.constant 0 : i32
    %c0_i32_1 = arith.constant 0 : i32
    return %arg0, %arg1, %c0_i32, %c0_i32_0 : i32, i32, i32, i32
  }
  func.func @transform_4(%arg0: i32, %arg1: i32) -> (i32, i32, i32, i32) {
    %c0_i32 = arith.constant 0 : i32
    %c0_i32_0 = arith.constant 0 : i32
    %c0_i32_1 = arith.constant 0 : i32
    return %arg0, %arg1, %c0_i32, %c0_i32_0 : i32, i32, i32, i32
  }
}

</mosaic_0001>

<llo_original>
// kernel: tile.8
$region0: #{tile.8}
  #allocation0 [shape = 's32[1]{0}', space=sflag, size = 0x4, scoped, tag = 'scoped memory for tile.8']
  %s0 = inlined_call_operand.vmem [shape: f32[8], index: 0, kind: input, shape index: {}]
  %s1 = inlined_call_operand.vmem [shape: f32[8,8], index: 1, kind: output, shape index: {}]
  // Predicated region
  $region2: #{tile.8} parent=0 // pred_check
    _
  $region3: #{tile.8} parent=0 // pred_check_branch
    %3 = sbr.rel (0) target = $region5
  $region4: #{tile.8} parent=0 // pred_region
    _
  $region5: #{tile.8} parent=0 // pred_fallthru
    _
  %v4 = vld [vmem:[%s0] ss:$0 sm:$0xff]
  %5 = vst [vmem:[%s1] sm:$0xff] %v4

// kernel: tile.9
$region0: #{tile.9}
  %s0 = inlined_call_operand.vmem [shape: f32[8,8], index: 0, kind: input, shape index: {}]
  %s1 = inlined_call_operand.vmem [shape: f32[1,64], index: 1, kind: output, shape index: {}]
  $region1: #{tile.9} parent=0
    #allocation0 [shape = 'u8[4096]{0}', space=vmem, size = 0x1000, scoped, tag = 'scoped mem for output reshape']
    %v2 = vld [vmem:[%s0] sm:$0x1]
    %vm3 = vcmask 64512
    %4 = vst.msk [vmem:[#allocation0] sm:$0x1] %vm3, %v2
    %s5 = scalar_lea.vmem %s0, 7
    %v6 = vld [vmem:[%s5] sm:$0x1]
    %7 = vrot.lane.b32.xlu0 %v6, 56
    %v8 = vpop.permute.xlu0 %7
    %vm9 = vcmask 523712
    %10 = vst.msk [vmem:[#allocation0] sm:$0x1] %vm9, %v8
    %s11 = scalar_lea.vmem %s0, 6
    %v12 = vld [vmem:[%s11] sm:$0x1]
    %13 = vrot.lane.b32.xlu0 %v12, 48
    %v14 = vpop.permute.xlu0 %13
    %vm15 = vcmask 458112
    %16 = vst.msk [vmem:[#allocation0] sm:$0x1] %vm15, %v14
    %s17 = scalar_lea.vmem %s0, 5
    %v18 = vld [vmem:[%s17] sm:$0x1]
    %19 = vrot.lane.b32.xlu0 %v18, 40
    %v20 = vpop.permute.xlu0 %19
    %vm21 = vcmask 392512
    %22 = vst.msk [vmem:[#allocation0] sm:$0x1] %vm21, %v20
    %s23 = scalar_lea.vmem %s0, 4
    %v24 = vld [vmem:[%s23] sm:$0x1]
    %25 = vrot.lane.b32.xlu0 %v24, 32
    %v26 = vpop.permute.xlu0 %25
    %vm27 = vcmask 326912
    %28 = vst.msk [vmem:[#allocation0] sm:$0x1] %vm27, %v26
    %s29 = scalar_lea.vmem %s0, 3
    %v30 = vld [vmem:[%s29] sm:$0x1]
    %31 = vrot.lane.b32.xlu0 %v30, 24
    %v32 = vpop.permute.xlu0 %31
    %vm33 = vcmask 261312
    %34 = vst.msk [vmem:[#allocation0] sm:$0x1] %vm33, %v32
    %s35 = scalar_lea.vmem %s0, 2
    %v36 = vld [vmem:[%s35] sm:$0x1]
    %37 = vrot.lane.b32.xlu0 %v36, 16
    %v38 = vpop.permute.xlu0 %37
    %vm39 = vcmask 195712
    %40 = vst.msk [vmem:[#allocation0] sm:$0x1] %vm39, %v38
    %s41 = scalar_lea.vmem %s0, 1
    %v42 = vld [vmem:[%s41] sm:$0x1]
    %43 = vrot.lane.b32.xlu0 %v42, 8
    %v44 = vpop.permute.xlu0 %43
    %vm45 = vcmask 130112
    %46 = vst.msk [vmem:[#allocation0] sm:$0x1] %vm45, %v44
    %s48 = ssub.s32 2, 1
    %v49 = vld [vmem:[#allocation0] sm:%s48]
    %s51 = ssub.s32 2, 1
    %52 = vst [vmem:[%s1] sm:%s51] %v49

// kernel: conv3d_block.1
$region0: #{conv3d_block.1}
  #allocation0 [shape = 'u32[]', space=smem, size = 0x4, offset = 0x4, fixed_abs, tag = 'smem constant byte address 0x4 - core index']
  #allocation1 [shape = 'u32[72,128]{1,0:T(1,128)}', space=vmem, size = 0x9000, scoped, tag = 'internal scratch']
  %s0 = inlined_call_operand.vmem [shape: f32[2,18,18,72], index: 0, kind: input, shape index: {}]
  %s1 = inlined_call_operand.vmem [shape: bf16[3,3,72,128], index: 1, kind: input, shape index: {}]
  %s2 = inlined_call_operand.vmem [shape: f32[1,64], index: 2, kind: input, shape index: {}]
  %s3 = inlined_call_operand.vmem [shape: f32[2,2,4,512], index: 3, kind: output, shape index: {0}]
  %s4 = inlined_call_operand.vmem [shape: f32[2,2,1,128], index: 4, kind: output, shape index: {1}]
  %5 = xla_tuple %s3, %s4
  %s6 = sld [smem:[#allocation0]]
  $region53: #{conv3d_block.1} parent=0
    _
  %s8 = ssub.s32 1, %s6
  %s9 = scalar_select 0, %s8, %s6
  loop: start=0, step=1, limit=6
  $region2: #{conv3d_block.1} parent=0 // loop_pre_header
    _
  $region3: #{conv3d_block.1} parent=0 // loop_header
    %s11 = sphi 0, %s15
    %p12 = scmp.ge.s32.totalorder %s11, 6
    %s18 = sphi 0, %s30
    %s19 = sphi 0, %s26
    %s20 = sphi 0, %s18
    %s21 = sphi 0, %s19
    %s22 = sphi 0, %s20
    %s23 = sphi 0, %s21
    %s33 = sphi 0, %s35
    %s36 = sphi 0, %s33
    %s37 = sphi 0, %s36
    %s53 = sphi 0, %s37
    %s57 = sphi 0, %s57
    %s59 = sphi 0, %s57
    %s60 = sphi 0, %s59
    %s74 = sphi 0, %s60
    %s78 = sphi 0, %s78
    %s80 = sphi 0, %s78
    %s81 = sphi 0, %s80
    %s95 = sphi 0, %s81
    %s103 = sphi 0, %s105
    %s106 = sphi 0, %s103
    %s107 = sphi 0, %s106
    %s123 = sphi 0, %s107
    %s131 = sphi 0, %s133
    %s134 = sphi 0, %s131
    %s135 = sphi 0, %s134
    %s151 = sphi 0, %s135
  $region4: #{conv3d_block.1} parent=0 // loop_header_branch
    %14 = sbr.rel (%p12) target = $region8
  $region5: #{conv3d_block.1} parent=0 // loop_body
    %s16 = ssub.s32 %s11, 1
    %s17 = ssub.s32 %s11, 2
    %s24 = sadd.s32 1, %s19
    %p25 = scmp.ge.s32.totalorder %s24, 2
    %s26 = scalar_select %p25, 0, %s24
    %s27 = sadd.s32 1, %s18
    %s28 = scalar_select %p25, %s27, %s18
    %p29 = scmp.ge.s32.totalorder %s28, 2
    %s30 = scalar_select %p29, 0, %s28
    %s31 = ssub.s32 %s18, %s30
    %p32 = scmp.eq.s32.totalorder %s31, 0
    %s34 = sadd.s32 %s33, 1
    %s35 = scalar_select %p32, %s33, %s34
    %p38 = pneg %p32
    %p39 = scmp.eq.s32.totalorder %s11, 3
    %p40 = por %p38, %p39
    %p41 = scmp.ne.s32.totalorder %s33, %s36
    %p42 = scmp.eq.s32.totalorder %s11, 0
    %p43 = por %p41, %p42
    %p44 = scmp.ne.s32.totalorder %s33, %s36
    %p45 = scmp.eq.s32.totalorder %s16, 3
    %p46 = por %p44, %p45
    %p47 = scmp.ne.s32.totalorder %s36, %s37
    %p48 = scmp.eq.s32.totalorder %s16, 0
    %p49 = por %p47, %p48
    %p50 = scmp.ne.s32.totalorder %s36, %s37
    %p51 = scmp.eq.s32.totalorder %s17, 3
    %p52 = por %p50, %p51
    %p54 = scmp.ne.s32.totalorder %s37, %s53
    %p55 = scmp.eq.s32.totalorder %s17, 0
    %p56 = por %p54, %p55
    %s58 = sadd.s32 %s57, 1
    %p61 = scmp.eq.s32.totalorder %s11, 3
    %p62 = scmp.ne.s32.totalorder %s57, %s59
    %p63 = scmp.eq.s32.totalorder %s11, 0
    %p64 = por %p62, %p63
    %p65 = scmp.ne.s32.totalorder %s57, %s59
    %p66 = scmp.eq.s32.totalorder %s16, 3
    %p67 = por %p65, %p66
    %p68 = scmp.ne.s32.totalorder %s59, %s60
    %p69 = scmp.eq.s32.totalorder %s16, 0
    %p70 = por %p68, %p69
    %p71 = scmp.ne.s32.totalorder %s59, %s60
    %p72 = scmp.eq.s32.totalorder %s17, 3
    %p73 = por %p71, %p72
    %p75 = scmp.ne.s32.totalorder %s60, %s74
    %p76 = scmp.eq.s32.totalorder %s17, 0
    %p77 = por %p75, %p76
    %s79 = sadd.s32 %s78, 1
    %p82 = scmp.eq.s32.totalorder %s11, 3
    %p83 = scmp.ne.s32.totalorder %s78, %s80
    %p84 = scmp.eq.s32.totalorder %s11, 0
    %p85 = por %p83, %p84
    %p86 = scmp.ne.s32.totalorder %s78, %s80
    %p87 = scmp.eq.s32.totalorder %s16, 3
    %p88 = por %p86, %p87
    %p89 = scmp.ne.s32.totalorder %s80, %s81
    %p90 = scmp.eq.s32.totalorder %s16, 0
    %p91 = por %p89, %p90
    %p92 = scmp.ne.s32.totalorder %s80, %s81
    %p93 = scmp.eq.s32.totalorder %s17, 3
    %p94 = por %p92, %p93
    %p96 = scmp.ne.s32.totalorder %s81, %s95
    %p97 = scmp.eq.s32.totalorder %s17, 0
    %p98 = por %p96, %p97
    %s99 = ssub.s32 %s18, %s30
    %s100 = ssub.s32 %s19, %s26
    %s101 = sor.u32 %s99, %s100
    %p102 = scmp.eq.s32.totalorder %s101, 0
    %s104 = sadd.s32 %s103, 1
    %s105 = scalar_select %p102, %s103, %s104
    %p108 = pneg %p102
    %p109 = scmp.eq.s32.totalorder %s11, 3
    %p110 = por %p108, %p109
    %p111 = scmp.ne.s32.totalorder %s103, %s106
    %p112 = scmp.eq.s32.totalorder %s11, 0
    %p113 = por %p111, %p112
    %p114 = scmp.ne.s32.totalorder %s103, %s106
    %p115 = scmp.eq.s32.totalorder %s16, 3
    %p116 = por %p114, %p115
    %p117 = scmp.ne.s32.totalorder %s106, %s107
    %p118 = scmp.eq.s32.totalorder %s16, 0
    %p119 = por %p117, %p118
    %p120 = scmp.ne.s32.totalorder %s106, %s107
    %p121 = scmp.eq.s32.totalorder %s17, 3
    %p122 = por %p120, %p121
    %p124 = scmp.ne.s32.totalorder %s107, %s123
    %p125 = scmp.eq.s32.totalorder %s17, 0
    %p126 = por %p124, %p125
    %s127 = ssub.s32 %s18, %s30
    %s128 = ssub.s32 %s19, %s26
    %s129 = sor.u32 %s127, %s128
    %p130 = scmp.eq.s32.totalorder %s129, 0
    %s132 = sadd.s32 %s131, 1
    %s133 = scalar_select %p130, %s131, %s132
    %p136 = pneg %p130
    %p137 = scmp.eq.s32.totalorder %s11, 3
    %p138 = por %p136, %p137
    %p139 = scmp.ne.s32.totalorder %s131, %s134
    %p140 = scmp.eq.s32.totalorder %s11, 0
    %p141 = por %p139, %p140
    %p142 = scmp.ne.s32.totalorder %s131, %s134
    %p143 = scmp.eq.s32.totalorder %s16, 3
    %p144 = por %p142, %p143
    %p145 = scmp.ne.s32.totalorder %s134, %s135
    %p146 = scmp.eq.s32.totalorder %s16, 0
    %p147 = por %p145, %p146
    %p148 = scmp.ne.s32.totalorder %s134, %s135
    %p149 = scmp.eq.s32.totalorder %s17, 3
    %p150 = por %p148, %p149
    %p152 = scmp.ne.s32.totalorder %s135, %s151
    %p153 = scmp.eq.s32.totalorder %s17, 0
    %p154 = por %p152, %p153
    %p155 = scmp.le.s32.totalorder 1, %s11
    %p156 = scmp.lt.s32.totalorder %s11, 5
    %p157 = pnand %p155, %p156
    %p158 = pneg %p157
    // Predicated region
    $region9: #{conv3d_block.1} parent=5 // pred_check
      _
    $region10: #{conv3d_block.1} parent=5 // pred_check_branch
      %160 = sbr.rel (%p157) target = $region12
    $region11: #{conv3d_block.1} parent=5 // pred_region
      %s161 = ssub.s32 %s11, 1
      // Predicated region
      $region13: #{conv3d_block.1} parent=11 // pred_check
        %p162 = pneg %p70
      $region14: #{conv3d_block.1} parent=11 // pred_check_branch
        %164 = sbr.rel (%p162) target = $region16
      $region15: #{conv3d_block.1} parent=11 // pred_region
        _
      $region16: #{conv3d_block.1} parent=11 // pred_fallthru
        _
      // Predicated region
      $region17: #{conv3d_block.1} parent=11 // pred_check
        %p165 = pneg %p91
      $region18: #{conv3d_block.1} parent=11 // pred_check_branch
        %167 = sbr.rel (%p165) target = $region20
      $region19: #{conv3d_block.1} parent=11 // pred_region
        _
      $region20: #{conv3d_block.1} parent=11 // pred_fallthru
        _
    $region12: #{conv3d_block.1} parent=5 // pred_fallthru
      _
    %p168 = scmp.lt.s32.totalorder %s11, 4
    // Predicated region
    $region21: #{conv3d_block.1} parent=5 // pred_check
      %p169 = pneg %p168
    $region22: #{conv3d_block.1} parent=5 // pred_check_branch
      %171 = sbr.rel (%p169) target = $region24
    $region23: #{conv3d_block.1} parent=5 // pred_region
      // Predicated region
      $region25: #{conv3d_block.1} parent=23 // pred_check
        %p172 = pneg %p43
      $region26: #{conv3d_block.1} parent=23 // pred_check_branch
        %174 = sbr.rel (%p172) target = $region28
      $region27: #{conv3d_block.1} parent=23 // pred_region
        %p175 = scmp.lt.s32.totalorder %s18, 1
        %s176 = scalar_select %p175, %s18, 1
        %s177 = smul.addr %s176, 54
        %s178 = smul.addr %s177, 8
        %s179 = scalar_lea.vmem %s0, %s178
      $region28: #{conv3d_block.1} parent=23 // pred_fallthru
        _
    $region24: #{conv3d_block.1} parent=5 // pred_fallthru
      _
    %p180 = scmp.le.s32.totalorder 1, %s11
    %p181 = scmp.lt.s32.totalorder %s11, 5
    %p182 = pnand %p180, %p181
    %p183 = pneg %p182
    // Predicated region
    $region29: #{conv3d_block.1} parent=5 // pred_check
      _
    $region30: #{conv3d_block.1} parent=5 // pred_check_branch
      %185 = sbr.rel (%p182) target = $region32
    $region31: #{conv3d_block.1} parent=5 // pred_region
      %s186 = ssub.s32 %s11, 1
      %p187 = scmp.lt.s32.totalorder %s20, 1
      %s188 = scalar_select %p187, %s20, 1
      %s189 = smul.addr %s188, 54
      %s190 = smul.addr %s189, 8
      %s191 = scalar_lea.vmem %s0, %s190
      %p192 = pneg %p49
      %p193 = pneg %p46
      %p194 = pneg %p70
      %p195 = pneg %p67
      %p196 = pneg %p91
      %p197 = pneg %p88
      %p198 = pneg %p119
      %p199 = pneg %p116
      %p200 = scmp.lt.s32.totalorder %s20, 1
      %s201 = scalar_select %p200, %s20, 1
      %p202 = scmp.lt.s32.totalorder %s21, 1
      %s203 = scalar_select %p202, %s21, 1
      %s204 = smul.addr %s203, 4
      %s205 = smul.addr %s201, 8
      %s206 = sadd.s32 %s204, %s205
      %s207 = smul.addr %s206, 4
      %s208 = scalar_lea.vmem %s3, %s207
      %p209 = pneg %p147
      %p210 = pneg %p144
      %p211 = scmp.lt.s32.totalorder %s20, 1
      %s212 = scalar_select %p211, %s20, 1
      %p213 = scmp.lt.s32.totalorder %s21, 1
      %s214 = scalar_select %p213, %s21, 1
      %s215 = smul.addr %s212, 2
      %s216 = sadd.s32 %s214, %s215
      %s217 = scalar_lea.vmem %s4, %s216
      %p218 = scmp.lt.s32.totalorder %s20, 1
      %s219 = scalar_select %p218, %s20, 1
      %s220 = smul.addr %s219, 54
      %s221 = smul.addr %s220, 8
      %s222 = scalar_lea.vmem %s0, %s221
      %p223 = scmp.lt.s32.totalorder %s20, 1
      %s224 = scalar_select %p223, %s20, 1
      %p225 = scmp.lt.s32.totalorder %s21, 1
      %s226 = scalar_select %p225, %s21, 1
      %s227 = smul.addr %s226, 4
      %s228 = smul.addr %s224, 8
      %s229 = sadd.s32 %s227, %s228
      %s230 = smul.addr %s229, 4
      %s231 = scalar_lea.vmem %s3, %s230
      %p232 = scmp.lt.s32.totalorder %s20, 1
      %s233 = scalar_select %p232, %s20, 1
      %p234 = scmp.lt.s32.totalorder %s21, 1
      %s235 = scalar_select %p234, %s21, 1
      %s236 = smul.addr %s233, 2
      %s237 = sadd.s32 %s235, %s236
      %s238 = scalar_lea.vmem %s4, %s237
      %s240 = smul.u32 %s21, 8
      %s241 = smul.u32 %s240, 24
      %s242 = scalar_lea.vmem %s222, %s241
      %v243 = vld [vmem:[%s242] sm:$0xff]
      %v244 = vld [vmem:[%s242 + $0x8] sm:$0xff]
      %v245 = vld [vmem:[%s242 + $0x18] sm:$0xff]
      %v246 = vld [vmem:[%s242 + $0x20] sm:$0xff]
      %v247 = vld [vmem:[%s242 + $0x30] sm:$0xff]
      %v248 = vld [vmem:[%s242 + $0x38] sm:$0xff]
      %v249 = vld [vmem:[%s242 + $0x48] sm:$0xff]
      %v250 = vld [vmem:[%s242 + $0x50] sm:$0xff]
      %v251 = vld [vmem:[%s242 + $0x60] sm:$0xff]
      %v252 = vld [vmem:[%s242 + $0x68] sm:$0xff]
      %v253 = vld [vmem:[%s242 + $0x78] sm:$0xff]
      %v254 = vld [vmem:[%s242 + $0x80] sm:$0xff]
      %v255 = vld [vmem:[%s242 + $0x90] sm:$0xff]
      %v256 = vld [vmem:[%s242 + $0x98] sm:$0xff]
      %v257 = vld [vmem:[%s242 + $0xa8] sm:$0xff]
      %v258 = vld [vmem:[%s242 + $0xb0] sm:$0xff]
      %v259 = vpack.c.bf16 %v244, %v243
      %v260 = vpack.c.bf16 %v246, %v245
      %v261 = vpack.c.bf16 %v248, %v247
      %v262 = vpack.c.bf16 %v250, %v249
      %v263 = vpack.c.bf16 %v252, %v251
      %v264 = vpack.c.bf16 %v254, %v253
      %v265 = vpack.c.bf16 %v256, %v255
      %v266 = vpack.c.bf16 %v258, %v257
      %v267 = vld [vmem:[%s1] sm:$0xf]
      %v268 = vld [vmem:[%s1 + $0x4] sm:$0xf]
      %v269 = vld [vmem:[%s1 + $0x8] sm:$0xf]
      %v270 = vld [vmem:[%s1 + $0xc] sm:$0xf]
      %v271 = vld [vmem:[%s1 + $0x10] sm:$0xf]
      %v272 = vld [vmem:[%s1 + $0x14] sm:$0xf]
      %v273 = vld [vmem:[%s1 + $0x18] sm:$0xf]
      %v274 = vld [vmem:[%s1 + $0x1c] sm:$0xf]
      %v275 = vld [vmem:[%s1 + $0x20] sm:$0xf]
      %v276 = vld [vmem:[%s242 + $0x1] sm:$0xff]
      %v277 = vld [vmem:[%s242 + $0x9] sm:$0xff]
      %v278 = vld [vmem:[%s242 + $0x19] sm:$0xff]
      %v279 = vld [vmem:[%s242 + $0x21] sm:$0xff]
      %v280 = vld [vmem:[%s242 + $0x31] sm:$0xff]
      %v281 = vld [vmem:[%s242 + $0x39] sm:$0xff]
      %v282 = vld [vmem:[%s242 + $0x49] sm:$0xff]
      %v283 = vld [vmem:[%s242 + $0x51] sm:$0xff]
      %v284 = vld [vmem:[%s242 + $0x61] sm:$0xff]
      %v285 = vld [vmem:[%s242 + $0x69] sm:$0xff]
      %v286 = vld [vmem:[%s242 + $0x79] sm:$0xff]
      %v287 = vld [vmem:[%s242 + $0x81] sm:$0xff]
      %v288 = vld [vmem:[%s242 + $0x91] sm:$0xff]
      %v289 = vld [vmem:[%s242 + $0x99] sm:$0xff]
      %v290 = vld [vmem:[%s242 + $0xa9] sm:$0xff]
      %v291 = vld [vmem:[%s242 + $0xb1] sm:$0xff]
      %v292 = vpack.c.bf16 %v277, %v276
      %v293 = vpack.c.bf16 %v279, %v278
      %v294 = vpack.c.bf16 %v281, %v280
      %v295 = vpack.c.bf16 %v283, %v282
      %v296 = vpack.c.bf16 %v285, %v284
      %v297 = vpack.c.bf16 %v287, %v286
      %v298 = vpack.c.bf16 %v289, %v288
      %v299 = vpack.c.bf16 %v291, %v290
      %s300 = scalar_lea.vmem %s1, 36
      %v301 = vld [vmem:[%s300] sm:$0xf]
      %v302 = vld [vmem:[%s300 + $0x4] sm:$0xf]
      %v303 = vld [vmem:[%s300 + $0x8] sm:$0xf]
      %v304 = vld [vmem:[%s300 + $0xc] sm:$0xf]
      %v305 = vld [vmem:[%s300 + $0x10] sm:$0xf]
      %v306 = vld [vmem:[%s300 + $0x14] sm:$0xf]
      %v307 = vld [vmem:[%s300 + $0x18] sm:$0xf]
      %v308 = vld [vmem:[%s300 + $0x1c] sm:$0xf]
      %v309 = vld [vmem:[%s300 + $0x20] sm:$0xf]
      %v319 = vunpack.c.l.b16 %v301
      %v320 = vunpack.c.l.b16 %v302
      %v321 = vunpack.c.l.b16 %v303
      %v322 = vunpack.c.l.b16 %v304
      %v323 = vunpack.c.l.b16 %v305
      %v324 = vunpack.c.l.b16 %v306
      %v325 = vunpack.c.l.b16 %v307
      %v326 = vunpack.c.l.b16 %v308
      %v327 = vunpack.c.l.b16 %v309
      %v328 = vpack.c.b16 %v320, %v319
      %v329 = vpack.c.b16 %v322, %v321
      %v330 = vpack.c.b16 %v324, %v323
      %v331 = vpack.c.b16 %v326, %v325
      %v332 = vpack.c.b16 %v327, %v327
      %vm337 = vcmask 588800
      %v339 = vsel %vm337, %v292, 0
      %v342 = vsel %vm337, %v293, 0
      %v345 = vsel %vm337, %v294, 0
      %v348 = vsel %vm337, %v295, 0
      %v351 = vsel %vm337, %v296, 0
      %v354 = vsel %vm337, %v297, 0
      %v357 = vsel %vm337, %v298, 0
      %v360 = vsel %vm337, %v299, 0
      %vm362 = vcmask 1043456
      %v364 = vsel %vm362, %v332, 0
      %366 = vmatpush.bf16.msra.mxu0 0
      %367 = vmatpush.bf16.msra.mxu0 0
      %368 = vmatpush.bf16.msra.mxu0 0
      %369 = vmatpush.bf16.msra.mxu0 %v364
      %370 = vmatpush.bf16.msra.mxu0 %v331
      %371 = vmatpush.bf16.msra.mxu0 %v330
      %372 = vmatpush.bf16.msra.mxu0 %v329
      %373 = vmatpush.bf16.msra.mxu0 %v328
      %374 = vmatmul.bf16.gmra.mxu0 %v339
      %v375 = vpop.f32.mrf.mxu0
      %v376 = vadd.f32 0.0, %v375
      %v377 = vpop.f32.mrf.mxu0
      %v378 = vadd.f32 0.0, %v377
      %379 = vmatmul.bf16.gmra.mxu0 %v342
      %v380 = vpop.f32.mrf.mxu0
      %v381 = vadd.f32 0.0, %v380
      %v382 = vpop.f32.mrf.mxu0
      %v383 = vadd.f32 0.0, %v382
      %384 = vmatmul.bf16.gmra.mxu0 %v345
      %v385 = vpop.f32.mrf.mxu0
      %v386 = vadd.f32 0.0, %v385
      %v387 = vpop.f32.mrf.mxu0
      %v388 = vadd.f32 0.0, %v387
      %389 = vmatmul.bf16.gmra.mxu0 %v348
      %v390 = vpop.f32.mrf.mxu0
      %v391 = vadd.f32 0.0, %v390
      %v392 = vpop.f32.mrf.mxu0
      %v393 = vadd.f32 0.0, %v392
      %394 = vmatmul.bf16.gmra.mxu0 %v351
      %v395 = vpop.f32.mrf.mxu0
      %v396 = vadd.f32 0.0, %v395
      %v397 = vpop.f32.mrf.mxu0
      %v398 = vadd.f32 0.0, %v397
      %399 = vmatmul.bf16.gmra.mxu0 %v354
      %v400 = vpop.f32.mrf.mxu0
      %v401 = vadd.f32 0.0, %v400
      %v402 = vpop.f32.mrf.mxu0
      %v403 = vadd.f32 0.0, %v402
      %404 = vmatmul.bf16.gmra.mxu0 %v357
      %v405 = vpop.f32.mrf.mxu0
      %v406 = vadd.f32 0.0, %v405
      %v407 = vpop.f32.mrf.mxu0
      %v408 = vadd.f32 0.0, %v407
      %409 = vmatmul.bf16.gmra.mxu0 %v360
      %v410 = vpop.f32.mrf.mxu0
      %v411 = vadd.f32 0.0, %v410
      %v412 = vpop.f32.mrf.mxu0
      %v413 = vadd.f32 0.0, %v412
      %414 = vdwg.mxu0
      %v424 = vunpack.c.l.b16 %v267
      %v425 = vunpack.c.l.b16 %v268
      %v426 = vunpack.c.l.b16 %v269
      %v427 = vunpack.c.l.b16 %v270
      %v428 = vunpack.c.l.b16 %v271
      %v429 = vunpack.c.l.b16 %v272
      %v430 = vunpack.c.l.b16 %v273
      %v431 = vunpack.c.l.b16 %v274
      %v432 = vunpack.c.l.b16 %v275
      %v433 = vpack.c.b16 %v425, %v424
      %v434 = vpack.c.b16 %v427, %v426
      %v435 = vpack.c.b16 %v429, %v428
      %v436 = vpack.c.b16 %v431, %v430
      %v437 = vpack.c.b16 %v432, %v432
      %v443 = vsel %vm337, %v259, 0
      %v446 = vsel %vm337, %v260, 0
      %v449 = vsel %vm337, %v261, 0
      %v452 = vsel %vm337, %v262, 0
      %v455 = vsel %vm337, %v263, 0
      %v458 = vsel %vm337, %v264, 0
      %v461 = vsel %vm337, %v265, 0
      %v464 = vsel %vm337, %v266, 0
      %v467 = vsel %vm362, %v437, 0
      %469 = vmatpush.bf16.msra.mxu0 0
      %470 = vmatpush.bf16.msra.mxu0 0
      %471 = vmatpush.bf16.msra.mxu0 0
      %472 = vmatpush.bf16.msra.mxu0 %v467
      %473 = vmatpush.bf16.msra.mxu0 %v436
      %474 = vmatpush.bf16.msra.mxu0 %v435
      %475 = vmatpush.bf16.msra.mxu0 %v434
      %476 = vmatpush.bf16.msra.mxu0 %v433
      %477 = vmatmul.bf16.gmra.mxu0 %v443
      %v478 = vpop.f32.mrf.mxu0
      %v479 = vadd.f32 %v376, %v478
      %v480 = vpop.f32.mrf.mxu0
      %v481 = vadd.f32 %v378, %v480
      %482 = vmatmul.bf16.gmra.mxu0 %v446
      %v483 = vpop.f32.mrf.mxu0
      %v484 = vadd.f32 %v381, %v483
      %v485 = vpop.f32.mrf.mxu0
      %v486 = vadd.f32 %v383, %v485
      %487 = vmatmul.bf16.gmra.mxu0 %v449
      %v488 = vpop.f32.mrf.mxu0
      %v489 = vadd.f32 %v386, %v488
      %v490 = vpop.f32.mrf.mxu0
      %v491 = vadd.f32 %v388, %v490
      %492 = vmatmul.bf16.gmra.mxu0 %v452
      %v493 = vpop.f32.mrf.mxu0
      %v494 = vadd.f32 %v391, %v493
      %v495 = vpop.f32.mrf.mxu0
      %v496 = vadd.f32 %v393, %v495
      %497 = vmatmul.bf16.gmra.mxu0 %v455
      %v498 = vpop.f32.mrf.mxu0
      %v499 = vadd.f32 %v396, %v498
      %v500 = vpop.f32.mrf.mxu0
      %v501 = vadd.f32 %v398, %v500
      %502 = vmatmul.bf16.gmra.mxu0 %v458
      %v503 = vpop.f32.mrf.mxu0
      %v504 = vadd.f32 %v401, %v503
      %v505 = vpop.f32.mrf.mxu0
      %v506 = vadd.f32 %v403, %v505
      %507 = vmatmul.bf16.gmra.mxu0 %v461
      %v508 = vpop.f32.mrf.mxu0
      %v509 = vadd.f32 %v406, %v508
      %v510 = vpop.f32.mrf.mxu0
      %v511 = vadd.f32 %v408, %v510
      %512 = vmatmul.bf16.gmra.mxu0 %v464
      %v513 = vpop.f32.mrf.mxu0
      %v514 = vadd.f32 %v411, %v513
      %v515 = vpop.f32.mrf.mxu0
      %v516 = vadd.f32 %v413, %v515
      %517 = vdwg.mxu0
      %v518 = vld [vmem:[%s242 + $0x2] sm:$0xff]
      %v519 = vld [vmem:[%s242 + $0xa] sm:$0xff]
      %v520 = vld [vmem:[%s242 + $0x1a] sm:$0xff]
      %v521 = vld [vmem:[%s242 + $0x22] sm:$0xff]
      %v522 = vld [vmem:[%s242 + $0x32] sm:$0xff]
      %v523 = vld [vmem:[%s242 + $0x3a] sm:$0xff]
      %v524 = vld [vmem:[%s242 + $0x4a] sm:$0xff]
      %v525 = vld [vmem:[%s242 + $0x52] sm:$0xff]
      %v526 = vld [vmem:[%s242 + $0x62] sm:$0xff]
      %v527 = vld [vmem:[%s242 + $0x6a] sm:$0xff]
      %v528 = vld [vmem:[%s242 + $0x7a] sm:$0xff]
      %v529 = vld [vmem:[%s242 + $0x82] sm:$0xff]
      %v530 = vld [vmem:[%s242 + $0x92] sm:$0xff]
      %v531 = vld [vmem:[%s242 + $0x9a] sm:$0xff]
      %v532 = vld [vmem:[%s242 + $0xaa] sm:$0xff]
      %v533 = vld [vmem:[%s242 + $0xb2] sm:$0xff]
      %v534 = vpack.c.bf16 %v519, %v518
      %v535 = vpack.c.bf16 %v521, %v520
      %v536 = vpack.c.bf16 %v523, %v522
      %v537 = vpack.c.bf16 %v525, %v524
      %v538 = vpack.c.bf16 %v527, %v526
      %v539 = vpack.c.bf16 %v529, %v528
      %v540 = vpack.c.bf16 %v531, %v530
      %v541 = vpack.c.bf16 %v533, %v532
      %s542 = scalar_lea.vmem %s1, 72
      %v543 = vld [vmem:[%s542] sm:$0xf]
      %v544 = vld [vmem:[%s542 + $0x4] sm:$0xf]
      %v545 = vld [vmem:[%s542 + $0x8] sm:$0xf]
      %v546 = vld [vmem:[%s542 + $0xc] sm:$0xf]
      %v547 = vld [vmem:[%s542 + $0x10] sm:$0xf]
      %v548 = vld [vmem:[%s542 + $0x14] sm:$0xf]
      %v549 = vld [vmem:[%s542 + $0x18] sm:$0xf]
      %v550 = vld [vmem:[%s542 + $0x1c] sm:$0xf]
      %v551 = vld [vmem:[%s542 + $0x20] sm:$0xf]
      %v561 = vunpack.c.l.b16 %v543
      %v562 = vunpack.c.l.b16 %v544
      %v563 = vunpack.c.l.b16 %v545
      %v564 = vunpack.c.l.b16 %v546
      %v565 = vunpack.c.l.b16 %v547
      %v566 = vunpack.c.l.b16 %v548
      %v567 = vunpack.c.l.b16 %v549
      %v568 = vunpack.c.l.b16 %v550
      %v569 = vunpack.c.l.b16 %v551
      %v570 = vpack.c.b16 %v562, %v561
      %v571 = vpack.c.b16 %v564, %v563
      %v572 = vpack.c.b16 %v566, %v565
      %v573 = vpack.c.b16 %v568, %v567
      %v574 = vpack.c.b16 %v569, %v569
      %v580 = vsel %vm337, %v534, 0
      %v583 = vsel %vm337, %v535, 0
      %v586 = vsel %vm337, %v536, 0
      %v589 = vsel %vm337, %v537, 0
      %v592 = vsel %vm337, %v538, 0
      %v595 = vsel %vm337, %v539, 0
      %v598 = vsel %vm337, %v540, 0
      %v601 = vsel %vm337, %v541, 0
      %v604 = vsel %vm362, %v574, 0
      %606 = vmatpush.bf16.msra.mxu0 0
      %607 = vmatpush.bf16.msra.mxu0 0
      %608 = vmatpush.bf16.msra.mxu0 0
      %609 = vmatpush.bf16.msra.mxu0 %v604
      %610 = vmatpush.bf16.msra.mxu0 %v573
      %611 = vmatpush.bf16.msra.mxu0 %v572
      %612 = vmatpush.bf16.msra.mxu0 %v571
      %613 = vmatpush.bf16.msra.mxu0 %v570
      %614 = vmatmul.bf16.gmra.mxu0 %v580
      %v615 = vpop.f32.mrf.mxu0
      %v616 = vadd.f32 0.0, %v615
      %v617 = vpop.f32.mrf.mxu0
      %v618 = vadd.f32 0.0, %v617
      %619 = vmatmul.bf16.gmra.mxu0 %v583
      %v620 = vpop.f32.mrf.mxu0
      %v621 = vadd.f32 0.0, %v620
      %v622 = vpop.f32.mrf.mxu0
      %v623 = vadd.f32 0.0, %v622
      %624 = vmatmul.bf16.gmra.mxu0 %v586
      %v625 = vpop.f32.mrf.mxu0
      %v626 = vadd.f32 0.0, %v625
      %v627 = vpop.f32.mrf.mxu0
      %v628 = vadd.f32 0.0, %v627
      %629 = vmatmul.bf16.gmra.mxu0 %v589
      %v630 = vpop.f32.mrf.mxu0
      %v631 = vadd.f32 0.0, %v630
      %v632 = vpop.f32.mrf.mxu0
      %v633 = vadd.f32 0.0, %v632
      %634 = vmatmul.bf16.gmra.mxu0 %v592
      %v635 = vpop.f32.mrf.mxu0
      %v636 = vadd.f32 0.0, %v635
      %v637 = vpop.f32.mrf.mxu0
      %v638 = vadd.f32 0.0, %v637
      %639 = vmatmul.bf16.gmra.mxu0 %v595
      %v640 = vpop.f32.mrf.mxu0
      %v641 = vadd.f32 0.0, %v640
      %v642 = vpop.f32.mrf.mxu0
      %v643 = vadd.f32 0.0, %v642
      %644 = vmatmul.bf16.gmra.mxu0 %v598
      %v645 = vpop.f32.mrf.mxu0
      %v646 = vadd.f32 0.0, %v645
      %v647 = vpop.f32.mrf.mxu0
      %v648 = vadd.f32 0.0, %v647
      %649 = vmatmul.bf16.gmra.mxu0 %v601
      %v650 = vpop.f32.mrf.mxu0
      %v651 = vadd.f32 0.0, %v650
      %v652 = vpop.f32.mrf.mxu0
      %v653 = vadd.f32 0.0, %v652
      %654 = vdwg.mxu0
      %v655 = vadd.f32 %v479, %v616
      %v656 = vadd.f32 %v481, %v618
      %v657 = vadd.f32 %v484, %v621
      %v658 = vadd.f32 %v486, %v623
      %v659 = vadd.f32 %v489, %v626
      %v660 = vadd.f32 %v491, %v628
      %v661 = vadd.f32 %v494, %v631
      %v662 = vadd.f32 %v496, %v633
      %v663 = vadd.f32 %v499, %v636
      %v664 = vadd.f32 %v501, %v638
      %v665 = vadd.f32 %v504, %v641
      %v666 = vadd.f32 %v506, %v643
      %v667 = vadd.f32 %v509, %v646
      %v668 = vadd.f32 %v511, %v648
      %v669 = vadd.f32 %v514, %v651
      %v670 = vadd.f32 %v516, %v653
      %s671 = sadd.s32 %s240, 1
      %s672 = smul.u32 %s671, 24
      %s673 = scalar_lea.vmem %s222, %s672
      %v674 = vld [vmem:[%s673] sm:$0xff]
      %v675 = vld [vmem:[%s673 + $0x8] sm:$0xff]
      %v676 = vld [vmem:[%s673 + $0x18] sm:$0xff]
      %v677 = vld [vmem:[%s673 + $0x20] sm:$0xff]
      %v678 = vld [vmem:[%s673 + $0x30] sm:$0xff]
      %v679 = vld [vmem:[%s673 + $0x38] sm:$0xff]
      %v680 = vld [vmem:[%s673 + $0x48] sm:$0xff]
      %v681 = vld [vmem:[%s673 + $0x50] sm:$0xff]
      %v682 = vld [vmem:[%s673 + $0x60] sm:$0xff]
      %v683 = vld [vmem:[%s673 + $0x68] sm:$0xff]
      %v684 = vld [vmem:[%s673 + $0x78] sm:$0xff]
      %v685 = vld [vmem:[%s673 + $0x80] sm:$0xff]
      %v686 = vld [vmem:[%s673 + $0x90] sm:$0xff]
      %v687 = vld [vmem:[%s673 + $0x98] sm:$0xff]
      %v688 = vld [vmem:[%s673 + $0xa8] sm:$0xff]
      %v689 = vld [vmem:[%s673 + $0xb0] sm:$0xff]
      %v690 = vpack.c.bf16 %v675, %v674
      %v691 = vpack.c.bf16 %v677, %v676
      %v692 = vpack.c.bf16 %v679, %v678
      %v693 = vpack.c.bf16 %v681, %v680
      %v694 = vpack.c.bf16 %v683, %v682
      %v695 = vpack.c.bf16 %v685, %v684
      %v696 = vpack.c.bf16 %v687, %v686
      %v697 = vpack.c.bf16 %v689, %v688
      %s698 = scalar_lea.vmem %s1, 108
      %v699 = vld [vmem:[%s698] sm:$0xf]
      %v700 = vld [vmem:[%s698 + $0x4] sm:$0xf]
      %v701 = vld [vmem:[%s698 + $0x8] sm:$0xf]
      %v702 = vld [vmem:[%s698 + $0xc] sm:$0xf]
      %v703 = vld [vmem:[%s698 + $0x10] sm:$0xf]
      %v704 = vld [vmem:[%s698 + $0x14] sm:$0xf]
      %v705 = vld [vmem:[%s698 + $0x18] sm:$0xf]
      %v706 = vld [vmem:[%s698 + $0x1c] sm:$0xf]
      %v707 = vld [vmem:[%s698 + $0x20] sm:$0xf]
      %v717 = vunpack.c.l.b16 %v699
      %v718 = vunpack.c.l.b16 %v700
      %v719 = vunpack.c.l.b16 %v701
      %v720 = vunpack.c.l.b16 %v702
      %v721 = vunpack.c.l.b16 %v703
      %v722 = vunpack.c.l.b16 %v704
      %v723 = vunpack.c.l.b16 %v705
      %v724 = vunpack.c.l.b16 %v706
      %v725 = vunpack.c.l.b16 %v707
      %v726 = vpack.c.b16 %v718, %v717
      %v727 = vpack.c.b16 %v720, %v719
      %v728 = vpack.c.b16 %v722, %v721
      %v729 = vpack.c.b16 %v724, %v723
      %v730 = vpack.c.b16 %v725, %v725
      %v736 = vsel %vm337, %v690, 0
      %v739 = vsel %vm337, %v691, 0
      %v742 = vsel %vm337, %v692, 0
      %v745 = vsel %vm337, %v693, 0
      %v748 = vsel %vm337, %v694, 0
      %v751 = vsel %vm337, %v695, 0
      %v754 = vsel %vm337, %v696, 0
      %v757 = vsel %vm337, %v697, 0
      %v760 = vsel %vm362, %v730, 0
      %762 = vmatpush.bf16.msra.mxu0 0
      %763 = vmatpush.bf16.msra.mxu0 0
      %764 = vmatpush.bf16.msra.mxu0 0
      %765 = vmatpush.bf16.msra.mxu0 %v760
      %766 = vmatpush.bf16.msra.mxu0 %v729
      %767 = vmatpush.bf16.msra.mxu0 %v728
      %768 = vmatpush.bf16.msra.mxu0 %v727
      %769 = vmatpush.bf16.msra.mxu0 %v726
      %770 = vmatmul.bf16.gmra.mxu0 %v736
      %v771 = vpop.f32.mrf.mxu0
      %v772 = vadd.f32 0.0, %v771
      %v773 = vpop.f32.mrf.mxu0
      %v774 = vadd.f32 0.0, %v773
      %775 = vmatmul.bf16.gmra.mxu0 %v739
      %v776 = vpop.f32.mrf.mxu0
      %v777 = vadd.f32 0.0, %v776
      %v778 = vpop.f32.mrf.mxu0
      %v779 = vadd.f32 0.0, %v778
      %780 = vmatmul.bf16.gmra.mxu0 %v742
      %v781 = vpop.f32.mrf.mxu0
      %v782 = vadd.f32 0.0, %v781
      %v783 = vpop.f32.mrf.mxu0
      %v784 = vadd.f32 0.0, %v783
      %785 = vmatmul.bf16.gmra.mxu0 %v745
      %v786 = vpop.f32.mrf.mxu0
      %v787 = vadd.f32 0.0, %v786
      %v788 = vpop.f32.mrf.mxu0
      %v789 = vadd.f32 0.0, %v788
      %790 = vmatmul.bf16.gmra.mxu0 %v748
      %v791 = vpop.f32.mrf.mxu0
      %v792 = vadd.f32 0.0, %v791
      %v793 = vpop.f32.mrf.mxu0
      %v794 = vadd.f32 0.0, %v793
      %795 = vmatmul.bf16.gmra.mxu0 %v751
      %v796 = vpop.f32.mrf.mxu0
      %v797 = vadd.f32 0.0, %v796
      %v798 = vpop.f32.mrf.mxu0
      %v799 = vadd.f32 0.0, %v798
      %800 = vmatmul.bf16.gmra.mxu0 %v754
      %v801 = vpop.f32.mrf.mxu0
      %v802 = vadd.f32 0.0, %v801
      %v803 = vpop.f32.mrf.mxu0
      %v804 = vadd.f32 0.0, %v803
      %805 = vmatmul.bf16.gmra.mxu0 %v757
      %v806 = vpop.f32.mrf.mxu0
      %v807 = vadd.f32 0.0, %v806
      %v808 = vpop.f32.mrf.mxu0
      %v809 = vadd.f32 0.0, %v808
      %810 = vdwg.mxu0
      %v811 = vadd.f32 %v655, %v772
      %v812 = vadd.f32 %v656, %v774
      %v813 = vadd.f32 %v657, %v777
      %v814 = vadd.f32 %v658, %v779
      %v815 = vadd.f32 %v659, %v782
      %v816 = vadd.f32 %v660, %v784
      %v817 = vadd.f32 %v661, %v787
      %v818 = vadd.f32 %v662, %v789
      %v819 = vadd.f32 %v663, %v792
      %v820 = vadd.f32 %v664, %v794
      %v821 = vadd.f32 %v665, %v797
      %v822 = vadd.f32 %v666, %v799
      %v823 = vadd.f32 %v667, %v802
      %v824 = vadd.f32 %v668, %v804
      %v825 = vadd.f32 %v669, %v807
      %v826 = vadd.f32 %v670, %v809
      %v827 = vld [vmem:[%s673 + $0x1] sm:$0xff]
      %v828 = vld [vmem:[%s673 + $0x9] sm:$0xff]
      %v829 = vld [vmem:[%s673 + $0x19] sm:$0xff]
      %v830 = vld [vmem:[%s673 + $0x21] sm:$0xff]
      %v831 = vld [vmem:[%s673 + $0x31] sm:$0xff]
      %v832 = vld [vmem:[%s673 + $0x39] sm:$0xff]
      %v833 = vld [vmem:[%s673 + $0x49] sm:$0xff]
      %v834 = vld [vmem:[%s673 + $0x51] sm:$0xff]
      %v835 = vld [vmem:[%s673 + $0x61] sm:$0xff]
      %v836 = vld [vmem:[%s673 + $0x69] sm:$0xff]
      %v837 = vld [vmem:[%s673 + $0x79] sm:$0xff]
      %v838 = vld [vmem:[%s673 + $0x81] sm:$0xff]
      %v839 = vld [vmem:[%s673 + $0x91] sm:$0xff]
      %v840 = vld [vmem:[%s673 + $0x99] sm:$0xff]
      %v841 = vld [vmem:[%s673 + $0xa9] sm:$0xff]
      %v842 = vld [vmem:[%s673 + $0xb1] sm:$0xff]
      %v843 = vpack.c.bf16 %v828, %v827
      %v844 = vpack.c.bf16 %v830, %v829
      %v845 = vpack.c.bf16 %v832, %v831
      %v846 = vpack.c.bf16 %v834, %v833
      %v847 = vpack.c.bf16 %v836, %v835
      %v848 = vpack.c.bf16 %v838, %v837
      %v849 = vpack.c.bf16 %v840, %v839
      %v850 = vpack.c.bf16 %v842, %v841
      %s851 = scalar_lea.vmem %s1, 144
      %v852 = vld [vmem:[%s851] sm:$0xf]
      %v853 = vld [vmem:[%s851 + $0x4] sm:$0xf]
      %v854 = vld [vmem:[%s851 + $0x8] sm:$0xf]
      %v855 = vld [vmem:[%s851 + $0xc] sm:$0xf]
      %v856 = vld [vmem:[%s851 + $0x10] sm:$0xf]
      %v857 = vld [vmem:[%s851 + $0x14] sm:$0xf]
      %v858 = vld [vmem:[%s851 + $0x18] sm:$0xf]
      %v859 = vld [vmem:[%s851 + $0x1c] sm:$0xf]
      %v860 = vld [vmem:[%s851 + $0x20] sm:$0xf]
      %v870 = vunpack.c.l.b16 %v852
      %v871 = vunpack.c.l.b16 %v853
      %v872 = vunpack.c.l.b16 %v854
      %v873 = vunpack.c.l.b16 %v855
      %v874 = vunpack.c.l.b16 %v856
      %v875 = vunpack.c.l.b16 %v857
      %v876 = vunpack.c.l.b16 %v858
      %v877 = vunpack.c.l.b16 %v859
      %v878 = vunpack.c.l.b16 %v860
      %v879 = vpack.c.b16 %v871, %v870
      %v880 = vpack.c.b16 %v873, %v872
      %v881 = vpack.c.b16 %v875, %v874
      %v882 = vpack.c.b16 %v877, %v876
      %v883 = vpack.c.b16 %v878, %v878
      %v889 = vsel %vm337, %v843, 0
      %v892 = vsel %vm337, %v844, 0
      %v895 = vsel %vm337, %v845, 0
      %v898 = vsel %vm337, %v846, 0
      %v901 = vsel %vm337, %v847, 0
      %v904 = vsel %vm337, %v848, 0
      %v907 = vsel %vm337, %v849, 0
      %v910 = vsel %vm337, %v850, 0
      %v913 = vsel %vm362, %v883, 0
      %915 = vmatpush.bf16.msra.mxu0 0
      %916 = vmatpush.bf16.msra.mxu0 0
      %917 = vmatpush.bf16.msra.mxu0 0
      %918 = vmatpush.bf16.msra.mxu0 %v913
      %919 = vmatpush.bf16.msra.mxu0 %v882
      %920 = vmatpush.bf16.msra.mxu0 %v881
      %921 = vmatpush.bf16.msra.mxu0 %v880
      %922 = vmatpush.bf16.msra.mxu0 %v879
      %923 = vmatmul.bf16.gmra.mxu0 %v889
      %v924 = vpop.f32.mrf.mxu0
      %v925 = vadd.f32 0.0, %v924
      %v926 = vpop.f32.mrf.mxu0
      %v927 = vadd.f32 0.0, %v926
      %928 = vmatmul.bf16.gmra.mxu0 %v892
      %v929 = vpop.f32.mrf.mxu0
      %v930 = vadd.f32 0.0, %v929
      %v931 = vpop.f32.mrf.mxu0
      %v932 = vadd.f32 0.0, %v931
      %933 = vmatmul.bf16.gmra.mxu0 %v895
      %v934 = vpop.f32.mrf.mxu0
      %v935 = vadd.f32 0.0, %v934
      %v936 = vpop.f32.mrf.mxu0
      %v937 = vadd.f32 0.0, %v936
      %938 = vmatmul.bf16.gmra.mxu0 %v898
      %v939 = vpop.f32.mrf.mxu0
      %v940 = vadd.f32 0.0, %v939
      %v941 = vpop.f32.mrf.mxu0
      %v942 = vadd.f32 0.0, %v941
      %943 = vmatmul.bf16.gmra.mxu0 %v901
      %v944 = vpop.f32.mrf.mxu0
      %v945 = vadd.f32 0.0, %v944
      %v946 = vpop.f32.mrf.mxu0
      %v947 = vadd.f32 0.0, %v946
      %948 = vmatmul.bf16.gmra.mxu0 %v904
      %v949 = vpop.f32.mrf.mxu0
      %v950 = vadd.f32 0.0, %v949
      %v951 = vpop.f32.mrf.mxu0
      %v952 = vadd.f32 0.0, %v951
      %953 = vmatmul.bf16.gmra.mxu0 %v907
      %v954 = vpop.f32.mrf.mxu0
      %v955 = vadd.f32 0.0, %v954
      %v956 = vpop.f32.mrf.mxu0
      %v957 = vadd.f32 0.0, %v956
      %958 = vmatmul.bf16.gmra.mxu0 %v910
      %v959 = vpop.f32.mrf.mxu0
      %v960 = vadd.f32 0.0, %v959
      %v961 = vpop.f32.mrf.mxu0
      %v962 = vadd.f32 0.0, %v961
      %963 = vdwg.mxu0
      %v964 = vadd.f32 %v811, %v925
      %v965 = vadd.f32 %v812, %v927
      %v966 = vadd.f32 %v813, %v930
      %v967 = vadd.f32 %v814, %v932
      %v968 = vadd.f32 %v815, %v935
      %v969 = vadd.f32 %v816, %v937
      %v970 = vadd.f32 %v817, %v940
      %v971 = vadd.f32 %v818, %v942
      %v972 = vadd.f32 %v819, %v945
      %v973 = vadd.f32 %v820, %v947
      %v974 = vadd.f32 %v821, %v950
      %v975 = vadd.f32 %v822, %v952
      %v976 = vadd.f32 %v823, %v955
      %v977 = vadd.f32 %v824, %v957
      %v978 = vadd.f32 %v825, %v960
      %v979 = vadd.f32 %v826, %v962
      %v980 = vld [vmem:[%s673 + $0x2] sm:$0xff]
      %v981 = vld [vmem:[%s673 + $0xa] sm:$0xff]
      %v982 = vld [vmem:[%s673 + $0x1a] sm:$0xff]
      %v983 = vld [vmem:[%s673 + $0x22] sm:$0xff]
      %v984 = vld [vmem:[%s673 + $0x32] sm:$0xff]
      %v985 = vld [vmem:[%s673 + $0x3a] sm:$0xff]
      %v986 = vld [vmem:[%s673 + $0x4a] sm:$0xff]
      %v987 = vld [vmem:[%s673 + $0x52] sm:$0xff]
      %v988 = vld [vmem:[%s673 + $0x62] sm:$0xff]
      %v989 = vld [vmem:[%s673 + $0x6a] sm:$0xff]
      %v990 = vld [vmem:[%s673 + $0x7a] sm:$0xff]
      %v991 = vld [vmem:[%s673 + $0x82] sm:$0xff]
      %v992 = vld [vmem:[%s673 + $0x92] sm:$0xff]
      %v993 = vld [vmem:[%s673 + $0x9a] sm:$0xff]
      %v994 = vld [vmem:[%s673 + $0xaa] sm:$0xff]
      %v995 = vld [vmem:[%s673 + $0xb2] sm:$0xff]
      %v996 = vpack.c.bf16 %v981, %v980
      %v997 = vpack.c.bf16 %v983, %v982
      %v998 = vpack.c.bf16 %v985, %v984
      %v999 = vpack.c.bf16 %v987, %v986
      %v1000 = vpack.c.bf16 %v989, %v988
      %v1001 = vpack.c.bf16 %v991, %v990
      %v1002 = vpack.c.bf16 %v993, %v992
      %v1003 = vpack.c.bf16 %v995, %v994
      %s1004 = scalar_lea.vmem %s1, 180
      %v1005 = vld [vmem:[%s1004] sm:$0xf]
      %v1006 = vld [vmem:[%s1004 + $0x4] sm:$0xf]
      %v1007 = vld [vmem:[%s1004 + $0x8] sm:$0xf]
      %v1008 = vld [vmem:[%s1004 + $0xc] sm:$0xf]
      %v1009 = vld [vmem:[%s1004 + $0x10] sm:$0xf]
      %v1010 = vld [vmem:[%s1004 + $0x14] sm:$0xf]
      %v1011 = vld [vmem:[%s1004 + $0x18] sm:$0xf]
      %v1012 = vld [vmem:[%s1004 + $0x1c] sm:$0xf]
      %v1013 = vld [vmem:[%s1004 + $0x20] sm:$0xf]
      %v1023 = vunpack.c.l.b16 %v1005
      %v1024 = vunpack.c.l.b16 %v1006
      %v1025 = vunpack.c.l.b16 %v1007
      %v1026 = vunpack.c.l.b16 %v1008
      %v1027 = vunpack.c.l.b16 %v1009
      %v1028 = vunpack.c.l.b16 %v1010
      %v1029 = vunpack.c.l.b16 %v1011
      %v1030 = vunpack.c.l.b16 %v1012
      %v1031 = vunpack.c.l.b16 %v1013
      %v1032 = vpack.c.b16 %v1024, %v1023
      %v1033 = vpack.c.b16 %v1026, %v1025
      %v1034 = vpack.c.b16 %v1028, %v1027
      %v1035 = vpack.c.b16 %v1030, %v1029
      %v1036 = vpack.c.b16 %v1031, %v1031
      %v1042 = vsel %vm337, %v996, 0
      %v1045 = vsel %vm337, %v997, 0
      %v1048 = vsel %vm337, %v998, 0
      %v1051 = vsel %vm337, %v999, 0
      %v1054 = vsel %vm337, %v1000, 0
      %v1057 = vsel %vm337, %v1001, 0
      %v1060 = vsel %vm337, %v1002, 0
      %v1063 = vsel %vm337, %v1003, 0
      %v1066 = vsel %vm362, %v1036, 0
      %1068 = vmatpush.bf16.msra.mxu0 0
      %1069 = vmatpush.bf16.msra.mxu0 0
      %1070 = vmatpush.bf16.msra.mxu0 0
      %1071 = vmatpush.bf16.msra.mxu0 %v1066
      %1072 = vmatpush.bf16.msra.mxu0 %v1035
      %1073 = vmatpush.bf16.msra.mxu0 %v1034
      %1074 = vmatpush.bf16.msra.mxu0 %v1033
      %1075 = vmatpush.bf16.msra.mxu0 %v1032
      %1076 = vmatmul.bf16.gmra.mxu0 %v1042
      %v1077 = vpop.f32.mrf.mxu0
      %v1078 = vadd.f32 0.0, %v1077
      %v1079 = vpop.f32.mrf.mxu0
      %v1080 = vadd.f32 0.0, %v1079
      %1081 = vmatmul.bf16.gmra.mxu0 %v1045
      %v1082 = vpop.f32.mrf.mxu0
      %v1083 = vadd.f32 0.0, %v1082
      %v1084 = vpop.f32.mrf.mxu0
      %v1085 = vadd.f32 0.0, %v1084
      %1086 = vmatmul.bf16.gmra.mxu0 %v1048
      %v1087 = vpop.f32.mrf.mxu0
      %v1088 = vadd.f32 0.0, %v1087
      %v1089 = vpop.f32.mrf.mxu0
      %v1090 = vadd.f32 0.0, %v1089
      %1091 = vmatmul.bf16.gmra.mxu0 %v1051
      %v1092 = vpop.f32.mrf.mxu0
      %v1093 = vadd.f32 0.0, %v1092
      %v1094 = vpop.f32.mrf.mxu0
      %v1095 = vadd.f32 0.0, %v1094
      %1096 = vmatmul.bf16.gmra.mxu0 %v1054
      %v1097 = vpop.f32.mrf.mxu0
      %v1098 = vadd.f32 0.0, %v1097
      %v1099 = vpop.f32.mrf.mxu0
      %v1100 = vadd.f32 0.0, %v1099
      %1101 = vmatmul.bf16.gmra.mxu0 %v1057
      %v1102 = vpop.f32.mrf.mxu0
      %v1103 = vadd.f32 0.0, %v1102
      %v1104 = vpop.f32.mrf.mxu0
      %v1105 = vadd.f32 0.0, %v1104
      %1106 = vmatmul.bf16.gmra.mxu0 %v1060
      %v1107 = vpop.f32.mrf.mxu0
      %v1108 = vadd.f32 0.0, %v1107
      %v1109 = vpop.f32.mrf.mxu0
      %v1110 = vadd.f32 0.0, %v1109
      %1111 = vmatmul.bf16.gmra.mxu0 %v1063
      %v1112 = vpop.f32.mrf.mxu0
      %v1113 = vadd.f32 0.0, %v1112
      %v1114 = vpop.f32.mrf.mxu0
      %v1115 = vadd.f32 0.0, %v1114
      %1116 = vdwg.mxu0
      %v1117 = vadd.f32 %v964, %v1078
      %v1118 = vadd.f32 %v965, %v1080
      %v1119 = vadd.f32 %v966, %v1083
      %v1120 = vadd.f32 %v967, %v1085
      %v1121 = vadd.f32 %v968, %v1088
      %v1122 = vadd.f32 %v969, %v1090
      %v1123 = vadd.f32 %v970, %v1093
      %v1124 = vadd.f32 %v971, %v1095
      %v1125 = vadd.f32 %v972, %v1098
      %v1126 = vadd.f32 %v973, %v1100
      %v1127 = vadd.f32 %v974, %v1103
      %v1128 = vadd.f32 %v975, %v1105
      %v1129 = vadd.f32 %v976, %v1108
      %v1130 = vadd.f32 %v977, %v1110
      %v1131 = vadd.f32 %v978, %v1113
      %v1132 = vadd.f32 %v979, %v1115
      %s1133 = sadd.s32 %s240, 2
      %s1134 = smul.u32 %s1133, 24
      %s1135 = scalar_lea.vmem %s222, %s1134
      %v1136 = vld [vmem:[%s1135] sm:$0xff]
      %v1137 = vld [vmem:[%s1135 + $0x8] sm:$0xff]
      %v1138 = vld [vmem:[%s1135 + $0x18] sm:$0xff]
      %v1139 = vld [vmem:[%s1135 + $0x20] sm:$0xff]
      %v1140 = vld [vmem:[%s1135 + $0x30] sm:$0xff]
      %v1141 = vld [vmem:[%s1135 + $0x38] sm:$0xff]
      %v1142 = vld [vmem:[%s1135 + $0x48] sm:$0xff]
      %v1143 = vld [vmem:[%s1135 + $0x50] sm:$0xff]
      %v1144 = vld [vmem:[%s1135 + $0x60] sm:$0xff]
      %v1145 = vld [vmem:[%s1135 + $0x68] sm:$0xff]
      %v1146 = vld [vmem:[%s1135 + $0x78] sm:$0xff]
      %v1147 = vld [vmem:[%s1135 + $0x80] sm:$0xff]
      %v1148 = vld [vmem:[%s1135 + $0x90] sm:$0xff]
      %v1149 = vld [vmem:[%s1135 + $0x98] sm:$0xff]
      %v1150 = vld [vmem:[%s1135 + $0xa8] sm:$0xff]
      %v1151 = vld [vmem:[%s1135 + $0xb0] sm:$0xff]
      %v1152 = vpack.c.bf16 %v1137, %v1136
      %v1153 = vpack.c.bf16 %v1139, %v1138
      %v1154 = vpack.c.bf16 %v1141, %v1140
      %v1155 = vpack.c.bf16 %v1143, %v1142
      %v1156 = vpack.c.bf16 %v1145, %v1144
      %v1157 = vpack.c.bf16 %v1147, %v1146
      %v1158 = vpack.c.bf16 %v1149, %v1148
      %v1159 = vpack.c.bf16 %v1151, %v1150
      %s1160 = scalar_lea.vmem %s1, 216
      %v1161 = vld [vmem:[%s1160] sm:$0xf]
      %v1162 = vld [vmem:[%s1160 + $0x4] sm:$0xf]
      %v1163 = vld [vmem:[%s1160 + $0x8] sm:$0xf]
      %v1164 = vld [vmem:[%s1160 + $0xc] sm:$0xf]
      %v1165 = vld [vmem:[%s1160 + $0x10] sm:$0xf]
      %v1166 = vld [vmem:[%s1160 + $0x14] sm:$0xf]
      %v1167 = vld [vmem:[%s1160 + $0x18] sm:$0xf]
      %v1168 = vld [vmem:[%s1160 + $0x1c] sm:$0xf]
      %v1169 = vld [vmem:[%s1160 + $0x20] sm:$0xf]
      %v1179 = vunpack.c.l.b16 %v1161
      %v1180 = vunpack.c.l.b16 %v1162
      %v1181 = vunpack.c.l.b16 %v1163
      %v1182 = vunpack.c.l.b16 %v1164
      %v1183 = vunpack.c.l.b16 %v1165
      %v1184 = vunpack.c.l.b16 %v1166
      %v1185 = vunpack.c.l.b16 %v1167
      %v1186 = vunpack.c.l.b16 %v1168
      %v1187 = vunpack.c.l.b16 %v1169
      %v1188 = vpack.c.b16 %v1180, %v1179
      %v1189 = vpack.c.b16 %v1182, %v1181
      %v1190 = vpack.c.b16 %v1184, %v1183
      %v1191 = vpack.c.b16 %v1186, %v1185
      %v1192 = vpack.c.b16 %v1187, %v1187
      %v1198 = vsel %vm337, %v1152, 0
      %v1201 = vsel %vm337, %v1153, 0
      %v1204 = vsel %vm337, %v1154, 0
      %v1207 = vsel %vm337, %v1155, 0
      %v1210 = vsel %vm337, %v1156, 0
      %v1213 = vsel %vm337, %v1157, 0
      %v1216 = vsel %vm337, %v1158, 0
      %v1219 = vsel %vm337, %v1159, 0
      %v1222 = vsel %vm362, %v1192, 0
      %1224 = vmatpush.bf16.msra.mxu0 0
      %1225 = vmatpush.bf16.msra.mxu0 0
      %1226 = vmatpush.bf16.msra.mxu0 0
      %1227 = vmatpush.bf16.msra.mxu0 %v1222
      %1228 = vmatpush.bf16.msra.mxu0 %v1191
      %1229 = vmatpush.bf16.msra.mxu0 %v1190
      %1230 = vmatpush.bf16.msra.mxu0 %v1189
      %1231 = vmatpush.bf16.msra.mxu0 %v1188
      %1232 = vmatmul.bf16.gmra.mxu0 %v1198
      %v1233 = vpop.f32.mrf.mxu0
      %v1234 = vadd.f32 0.0, %v1233
      %v1235 = vpop.f32.mrf.mxu0
      %v1236 = vadd.f32 0.0, %v1235
      %1237 = vmatmul.bf16.gmra.mxu0 %v1201
      %v1238 = vpop.f32.mrf.mxu0
      %v1239 = vadd.f32 0.0, %v1238
      %v1240 = vpop.f32.mrf.mxu0
      %v1241 = vadd.f32 0.0, %v1240
      %1242 = vmatmul.bf16.gmra.mxu0 %v1204
      %v1243 = vpop.f32.mrf.mxu0
      %v1244 = vadd.f32 0.0, %v1243
      %v1245 = vpop.f32.mrf.mxu0
      %v1246 = vadd.f32 0.0, %v1245
      %1247 = vmatmul.bf16.gmra.mxu0 %v1207
      %v1248 = vpop.f32.mrf.mxu0
      %v1249 = vadd.f32 0.0, %v1248
      %v1250 = vpop.f32.mrf.mxu0
      %v1251 = vadd.f32 0.0, %v1250
      %1252 = vmatmul.bf16.gmra.mxu0 %v1210
      %v1253 = vpop.f32.mrf.mxu0
      %v1254 = vadd.f32 0.0, %v1253
      %v1255 = vpop.f32.mrf.mxu0
      %v1256 = vadd.f32 0.0, %v1255
      %1257 = vmatmul.bf16.gmra.mxu0 %v1213
      %v1258 = vpop.f32.mrf.mxu0
      %v1259 = vadd.f32 0.0, %v1258
      %v1260 = vpop.f32.mrf.mxu0
      %v1261 = vadd.f32 0.0, %v1260
      %1262 = vmatmul.bf16.gmra.mxu0 %v1216
      %v1263 = vpop.f32.mrf.mxu0
      %v1264 = vadd.f32 0.0, %v1263
      %v1265 = vpop.f32.mrf.mxu0
      %v1266 = vadd.f32 0.0, %v1265
      %1267 = vmatmul.bf16.gmra.mxu0 %v1219
      %v1268 = vpop.f32.mrf.mxu0
      %v1269 = vadd.f32 0.0, %v1268
      %v1270 = vpop.f32.mrf.mxu0
      %v1271 = vadd.f32 0.0, %v1270
      %1272 = vdwg.mxu0
      %v1273 = vadd.f32 %v1117, %v1234
      %v1274 = vadd.f32 %v1118, %v1236
      %v1275 = vadd.f32 %v1119, %v1239
      %v1276 = vadd.f32 %v1120, %v1241
      %v1277 = vadd.f32 %v1121, %v1244
      %v1278 = vadd.f32 %v1122, %v1246
      %v1279 = vadd.f32 %v1123, %v1249
      %v1280 = vadd.f32 %v1124, %v1251
      %v1281 = vadd.f32 %v1125, %v1254
      %v1282 = vadd.f32 %v1126, %v1256
      %v1283 = vadd.f32 %v1127, %v1259
      %v1284 = vadd.f32 %v1128, %v1261
      %v1285 = vadd.f32 %v1129, %v1264
      %v1286 = vadd.f32 %v1130, %v1266
      %v1287 = vadd.f32 %v1131, %v1269
      %v1288 = vadd.f32 %v1132, %v1271
      %v1289 = vld [vmem:[%s1135 + $0x1] sm:$0xff]
      %v1290 = vld [vmem:[%s1135 + $0x9] sm:$0xff]
      %v1291 = vld [vmem:[%s1135 + $0x19] sm:$0xff]
      %v1292 = vld [vmem:[%s1135 + $0x21] sm:$0xff]
      %v1293 = vld [vmem:[%s1135 + $0x31] sm:$0xff]
      %v1294 = vld [vmem:[%s1135 + $0x39] sm:$0xff]
      %v1295 = vld [vmem:[%s1135 + $0x49] sm:$0xff]
      %v1296 = vld [vmem:[%s1135 + $0x51] sm:$0xff]
      %v1297 = vld [vmem:[%s1135 + $0x61] sm:$0xff]
      %v1298 = vld [vmem:[%s1135 + $0x69] sm:$0xff]
      %v1299 = vld [vmem:[%s1135 + $0x79] sm:$0xff]
      %v1300 = vld [vmem:[%s1135 + $0x81] sm:$0xff]
      %v1301 = vld [vmem:[%s1135 + $0x91] sm:$0xff]
      %v1302 = vld [vmem:[%s1135 + $0x99] sm:$0xff]
      %v1303 = vld [vmem:[%s1135 + $0xa9] sm:$0xff]
      %v1304 = vld [vmem:[%s1135 + $0xb1] sm:$0xff]
      %v1305 = vpack.c.bf16 %v1290, %v1289
      %v1306 = vpack.c.bf16 %v1292, %v1291
      %v1307 = vpack.c.bf16 %v1294, %v1293
      %v1308 = vpack.c.bf16 %v1296, %v1295
      %v1309 = vpack.c.bf16 %v1298, %v1297
      %v1310 = vpack.c.bf16 %v1300, %v1299
      %v1311 = vpack.c.bf16 %v1302, %v1301
      %v1312 = vpack.c.bf16 %v1304, %v1303
      %s1313 = scalar_lea.vmem %s1, 252
      %v1314 = vld [vmem:[%s1313] sm:$0xf]
      %v1315 = vld [vmem:[%s1313 + $0x4] sm:$0xf]
      %v1316 = vld [vmem:[%s1313 + $0x8] sm:$0xf]
      %v1317 = vld [vmem:[%s1313 + $0xc] sm:$0xf]
      %v1318 = vld [vmem:[%s1313 + $0x10] sm:$0xf]
      %v1319 = vld [vmem:[%s1313 + $0x14] sm:$0xf]
      %v1320 = vld [vmem:[%s1313 + $0x18] sm:$0xf]
      %v1321 = vld [vmem:[%s1313 + $0x1c] sm:$0xf]
      %v1322 = vld [vmem:[%s1313 + $0x20] sm:$0xf]
      %v1332 = vunpack.c.l.b16 %v1314
      %v1333 = vunpack.c.l.b16 %v1315
      %v1334 = vunpack.c.l.b16 %v1316
      %v1335 = vunpack.c.l.b16 %v1317
      %v1336 = vunpack.c.l.b16 %v1318
      %v1337 = vunpack.c.l.b16 %v1319
      %v1338 = vunpack.c.l.b16 %v1320
      %v1339 = vunpack.c.l.b16 %v1321
      %v1340 = vunpack.c.l.b16 %v1322
      %v1341 = vpack.c.b16 %v1333, %v1332
      %v1342 = vpack.c.b16 %v1335, %v1334
      %v1343 = vpack.c.b16 %v1337, %v1336
      %v1344 = vpack.c.b16 %v1339, %v1338
      %v1345 = vpack.c.b16 %v1340, %v1340
      %v1351 = vsel %vm337, %v1305, 0
      %v1354 = vsel %vm337, %v1306, 0
      %v1357 = vsel %vm337, %v1307, 0
      %v1360 = vsel %vm337, %v1308, 0
      %v1363 = vsel %vm337, %v1309, 0
      %v1366 = vsel %vm337, %v1310, 0
      %v1369 = vsel %vm337, %v1311, 0
      %v1372 = vsel %vm337, %v1312, 0
      %v1375 = vsel %vm362, %v1345, 0
      %1377 = vmatpush.bf16.msra.mxu0 0
      %1378 = vmatpush.bf16.msra.mxu0 0
      %1379 = vmatpush.bf16.msra.mxu0 0
      %1380 = vmatpush.bf16.msra.mxu0 %v1375
      %1381 = vmatpush.bf16.msra.mxu0 %v1344
      %1382 = vmatpush.bf16.msra.mxu0 %v1343
      %1383 = vmatpush.bf16.msra.mxu0 %v1342
      %1384 = vmatpush.bf16.msra.mxu0 %v1341
      %1385 = vmatmul.bf16.gmra.mxu0 %v1351
      %v1386 = vpop.f32.mrf.mxu0
      %v1387 = vadd.f32 0.0, %v1386
      %v1388 = vpop.f32.mrf.mxu0
      %v1389 = vadd.f32 0.0, %v1388
      %1390 = vmatmul.bf16.gmra.mxu0 %v1354
      %v1391 = vpop.f32.mrf.mxu0
      %v1392 = vadd.f32 0.0, %v1391
      %v1393 = vpop.f32.mrf.mxu0
      %v1394 = vadd.f32 0.0, %v1393
      %1395 = vmatmul.bf16.gmra.mxu0 %v1357
      %v1396 = vpop.f32.mrf.mxu0
      %v1397 = vadd.f32 0.0, %v1396
      %v1398 = vpop.f32.mrf.mxu0
      %v1399 = vadd.f32 0.0, %v1398
      %1400 = vmatmul.bf16.gmra.mxu0 %v1360
      %v1401 = vpop.f32.mrf.mxu0
      %v1402 = vadd.f32 0.0, %v1401
      %v1403 = vpop.f32.mrf.mxu0
      %v1404 = vadd.f32 0.0, %v1403
      %1405 = vmatmul.bf16.gmra.mxu0 %v1363
      %v1406 = vpop.f32.mrf.mxu0
      %v1407 = vadd.f32 0.0, %v1406
      %v1408 = vpop.f32.mrf.mxu0
      %v1409 = vadd.f32 0.0, %v1408
      %1410 = vmatmul.bf16.gmra.mxu0 %v1366
      %v1411 = vpop.f32.mrf.mxu0
      %v1412 = vadd.f32 0.0, %v1411
      %v1413 = vpop.f32.mrf.mxu0
      %v1414 = vadd.f32 0.0, %v1413
      %1415 = vmatmul.bf16.gmra.mxu0 %v1369
      %v1416 = vpop.f32.mrf.mxu0
      %v1417 = vadd.f32 0.0, %v1416
      %v1418 = vpop.f32.mrf.mxu0
      %v1419 = vadd.f32 0.0, %v1418
      %1420 = vmatmul.bf16.gmra.mxu0 %v1372
      %v1421 = vpop.f32.mrf.mxu0
      %v1422 = vadd.f32 0.0, %v1421
      %v1423 = vpop.f32.mrf.mxu0
      %v1424 = vadd.f32 0.0, %v1423
      %1425 = vdwg.mxu0
      %v1426 = vadd.f32 %v1273, %v1387
      %v1427 = vadd.f32 %v1274, %v1389
      %v1428 = vadd.f32 %v1275, %v1392
      %v1429 = vadd.f32 %v1276, %v1394
      %v1430 = vadd.f32 %v1277, %v1397
      %v1431 = vadd.f32 %v1278, %v1399
      %v1432 = vadd.f32 %v1279, %v1402
      %v1433 = vadd.f32 %v1280, %v1404
      %v1434 = vadd.f32 %v1281, %v1407
      %v1435 = vadd.f32 %v1282, %v1409
      %v1436 = vadd.f32 %v1283, %v1412
      %v1437 = vadd.f32 %v1284, %v1414
      %v1438 = vadd.f32 %v1285, %v1417
      %v1439 = vadd.f32 %v1286, %v1419
      %v1440 = vadd.f32 %v1287, %v1422
      %v1441 = vadd.f32 %v1288, %v1424
      %v1442 = vld [vmem:[%s1135 + $0x2] sm:$0xff]
      %v1443 = vld [vmem:[%s1135 + $0xa] sm:$0xff]
      %v1444 = vld [vmem:[%s1135 + $0x1a] sm:$0xff]
      %v1445 = vld [vmem:[%s1135 + $0x22] sm:$0xff]
      %v1446 = vld [vmem:[%s1135 + $0x32] sm:$0xff]
      %v1447 = vld [vmem:[%s1135 + $0x3a] sm:$0xff]
      %v1448 = vld [vmem:[%s1135 + $0x4a] sm:$0xff]
      %v1449 = vld [vmem:[%s1135 + $0x52] sm:$0xff]
      %v1450 = vld [vmem:[%s1135 + $0x62] sm:$0xff]
      %v1451 = vld [vmem:[%s1135 + $0x6a] sm:$0xff]
      %v1452 = vld [vmem:[%s1135 + $0x7a] sm:$0xff]
      %v1453 = vld [vmem:[%s1135 + $0x82] sm:$0xff]
      %v1454 = vld [vmem:[%s1135 + $0x92] sm:$0xff]
      %v1455 = vld [vmem:[%s1135 + $0x9a] sm:$0xff]
      %v1456 = vld [vmem:[%s1135 + $0xaa] sm:$0xff]
      %v1457 = vld [vmem:[%s1135 + $0xb2] sm:$0xff]
      %v1458 = vpack.c.bf16 %v1443, %v1442
      %v1459 = vpack.c.bf16 %v1445, %v1444
      %v1460 = vpack.c.bf16 %v1447, %v1446
      %v1461 = vpack.c.bf16 %v1449, %v1448
      %v1462 = vpack.c.bf16 %v1451, %v1450
      %v1463 = vpack.c.bf16 %v1453, %v1452
      %v1464 = vpack.c.bf16 %v1455, %v1454
      %v1465 = vpack.c.bf16 %v1457, %v1456
      %s1466 = scalar_lea.vmem %s1, 288
      %v1467 = vld [vmem:[%s1466] sm:$0xf]
      %v1468 = vld [vmem:[%s1466 + $0x4] sm:$0xf]
      %v1469 = vld [vmem:[%s1466 + $0x8] sm:$0xf]
      %v1470 = vld [vmem:[%s1466 + $0xc] sm:$0xf]
      %v1471 = vld [vmem:[%s1466 + $0x10] sm:$0xf]
      %v1472 = vld [vmem:[%s1466 + $0x14] sm:$0xf]
      %v1473 = vld [vmem:[%s1466 + $0x18] sm:$0xf]
      %v1474 = vld [vmem:[%s1466 + $0x1c] sm:$0xf]
      %v1475 = vld [vmem:[%s1466 + $0x20] sm:$0xf]
      %v1485 = vunpack.c.l.b16 %v1467
      %v1486 = vunpack.c.l.b16 %v1468
      %v1487 = vunpack.c.l.b16 %v1469
      %v1488 = vunpack.c.l.b16 %v1470
      %v1489 = vunpack.c.l.b16 %v1471
      %v1490 = vunpack.c.l.b16 %v1472
      %v1491 = vunpack.c.l.b16 %v1473
      %v1492 = vunpack.c.l.b16 %v1474
      %v1493 = vunpack.c.l.b16 %v1475
      %v1494 = vpack.c.b16 %v1486, %v1485
      %v1495 = vpack.c.b16 %v1488, %v1487
      %v1496 = vpack.c.b16 %v1490, %v1489
      %v1497 = vpack.c.b16 %v1492, %v1491
      %v1498 = vpack.c.b16 %v1493, %v1493
      %v1504 = vsel %vm337, %v1458, 0
      %v1507 = vsel %vm337, %v1459, 0
      %v1510 = vsel %vm337, %v1460, 0
      %v1513 = vsel %vm337, %v1461, 0
      %v1516 = vsel %vm337, %v1462, 0
      %v1519 = vsel %vm337, %v1463, 0
      %v1522 = vsel %vm337, %v1464, 0
      %v1525 = vsel %vm337, %v1465, 0
      %v1528 = vsel %vm362, %v1498, 0
      %1530 = vmatpush.bf16.msra.mxu0 0
      %1531 = vmatpush.bf16.msra.mxu0 0
      %1532 = vmatpush.bf16.msra.mxu0 0
      %1533 = vmatpush.bf16.msra.mxu0 %v1528
      %1534 = vmatpush.bf16.msra.mxu0 %v1497
      %1535 = vmatpush.bf16.msra.mxu0 %v1496
      %1536 = vmatpush.bf16.msra.mxu0 %v1495
      %1537 = vmatpush.bf16.msra.mxu0 %v1494
      %1538 = vmatmul.bf16.gmra.mxu0 %v1504
      %v1539 = vpop.f32.mrf.mxu0
      %v1540 = vadd.f32 0.0, %v1539
      %v1541 = vpop.f32.mrf.mxu0
      %v1542 = vadd.f32 0.0, %v1541
      %1543 = vmatmul.bf16.gmra.mxu0 %v1507
      %v1544 = vpop.f32.mrf.mxu0
      %v1545 = vadd.f32 0.0, %v1544
      %v1546 = vpop.f32.mrf.mxu0
      %v1547 = vadd.f32 0.0, %v1546
      %1548 = vmatmul.bf16.gmra.mxu0 %v1510
      %v1549 = vpop.f32.mrf.mxu0
      %v1550 = vadd.f32 0.0, %v1549
      %v1551 = vpop.f32.mrf.mxu0
      %v1552 = vadd.f32 0.0, %v1551
      %1553 = vmatmul.bf16.gmra.mxu0 %v1513
      %v1554 = vpop.f32.mrf.mxu0
      %v1555 = vadd.f32 0.0, %v1554
      %v1556 = vpop.f32.mrf.mxu0
      %v1557 = vadd.f32 0.0, %v1556
      %1558 = vmatmul.bf16.gmra.mxu0 %v1516
      %v1559 = vpop.f32.mrf.mxu0
      %v1560 = vadd.f32 0.0, %v1559
      %v1561 = vpop.f32.mrf.mxu0
      %v1562 = vadd.f32 0.0, %v1561
      %1563 = vmatmul.bf16.gmra.mxu0 %v1519
      %v1564 = vpop.f32.mrf.mxu0
      %v1565 = vadd.f32 0.0, %v1564
      %v1566 = vpop.f32.mrf.mxu0
      %v1567 = vadd.f32 0.0, %v1566
      %1568 = vmatmul.bf16.gmra.mxu0 %v1522
      %v1569 = vpop.f32.mrf.mxu0
      %v1570 = vadd.f32 0.0, %v1569
      %v1571 = vpop.f32.mrf.mxu0
      %v1572 = vadd.f32 0.0, %v1571
      %1573 = vmatmul.bf16.gmra.mxu0 %v1525
      %v1574 = vpop.f32.mrf.mxu0
      %v1575 = vadd.f32 0.0, %v1574
      %v1576 = vpop.f32.mrf.mxu0
      %v1577 = vadd.f32 0.0, %v1576
      %1578 = vdwg.mxu0
      %v1579 = vadd.f32 %v1426, %v1540
      %v1580 = vadd.f32 %v1427, %v1542
      %v1581 = vadd.f32 %v1428, %v1545
      %v1582 = vadd.f32 %v1429, %v1547
      %v1583 = vadd.f32 %v1430, %v1550
      %v1584 = vadd.f32 %v1431, %v1552
      %v1585 = vadd.f32 %v1432, %v1555
      %v1586 = vadd.f32 %v1433, %v1557
      %v1587 = vadd.f32 %v1434, %v1560
      %v1588 = vadd.f32 %v1435, %v1562
      %v1589 = vadd.f32 %v1436, %v1565
      %v1590 = vadd.f32 %v1437, %v1567
      %v1591 = vadd.f32 %v1438, %v1570
      %v1592 = vadd.f32 %v1439, %v1572
      %v1593 = vadd.f32 %v1440, %v1575
      %v1594 = vadd.f32 %v1441, %v1577
      %1611 = vrot.lane.b32.xlu0 %v1579, 64
      %v1612 = vpop.permute.xlu0 %1611
      %1613 = vrot.lane.b32.xlu0 %v1580, 64
      %v1614 = vpop.permute.xlu0 %1613
      %1615 = vrot.lane.b32.xlu0 %v1581, 64
      %v1616 = vpop.permute.xlu0 %1615
      %1617 = vrot.lane.b32.xlu0 %v1582, 64
      %v1618 = vpop.permute.xlu0 %1617
      %1619 = vrot.lane.b32.xlu0 %v1583, 64
      %v1620 = vpop.permute.xlu0 %1619
      %1621 = vrot.lane.b32.xlu0 %v1584, 64
      %v1622 = vpop.permute.xlu0 %1621
      %1623 = vrot.lane.b32.xlu0 %v1585, 64
      %v1624 = vpop.permute.xlu0 %1623
      %1625 = vrot.lane.b32.xlu0 %v1586, 64
      %v1626 = vpop.permute.xlu0 %1625
      %1627 = vrot.lane.b32.xlu0 %v1587, 64
      %v1628 = vpop.permute.xlu0 %1627
      %1629 = vrot.lane.b32.xlu0 %v1588, 64
      %v1630 = vpop.permute.xlu0 %1629
      %1631 = vrot.lane.b32.xlu0 %v1589, 64
      %v1632 = vpop.permute.xlu0 %1631
      %1633 = vrot.lane.b32.xlu0 %v1590, 64
      %v1634 = vpop.permute.xlu0 %1633
      %1635 = vrot.lane.b32.xlu0 %v1591, 64
      %v1636 = vpop.permute.xlu0 %1635
      %1637 = vrot.lane.b32.xlu0 %v1592, 64
      %v1638 = vpop.permute.xlu0 %1637
      %1639 = vrot.lane.b32.xlu0 %v1593, 64
      %v1640 = vpop.permute.xlu0 %1639
      %1641 = vrot.lane.b32.xlu0 %v1594, 64
      %v1642 = vpop.permute.xlu0 %1641
      %v1659 = vmax.f32 %v1579, %v1612
      %v1660 = vmax.f32 %v1580, %v1614
      %v1661 = vmax.f32 %v1581, %v1616
      %v1662 = vmax.f32 %v1582, %v1618
      %v1663 = vmax.f32 %v1583, %v1620
      %v1664 = vmax.f32 %v1584, %v1622
      %v1665 = vmax.f32 %v1585, %v1624
      %v1666 = vmax.f32 %v1586, %v1626
      %v1667 = vmax.f32 %v1587, %v1628
      %v1668 = vmax.f32 %v1588, %v1630
      %v1669 = vmax.f32 %v1589, %v1632
      %v1670 = vmax.f32 %v1590, %v1634
      %v1671 = vmax.f32 %v1591, %v1636
      %v1672 = vmax.f32 %v1592, %v1638
      %v1673 = vmax.f32 %v1593, %v1640
      %v1674 = vmax.f32 %v1594, %v1642
      %v1691 = vrot.slane %v1659, 2
      %v1692 = vrot.slane %v1659, 4
      %v1693 = vrot.slane %v1659, 6
      %v1694 = vrot.slane %v1660, 2
      %v1695 = vrot.slane %v1660, 4
      %v1696 = vrot.slane %v1660, 6
      %v1697 = vrot.slane %v1661, 2
      %v1698 = vrot.slane %v1661, 4
      %v1699 = vrot.slane %v1661, 6
      %v1700 = vrot.slane %v1662, 2
      %v1701 = vrot.slane %v1662, 4
      %v1702 = vrot.slane %v1662, 6
      %v1703 = vrot.slane %v1663, 2
      %v1704 = vrot.slane %v1663, 4
      %v1705 = vrot.slane %v1663, 6
      %v1706 = vrot.slane %v1664, 2
      %v1707 = vrot.slane %v1664, 4
      %v1708 = vrot.slane %v1664, 6
      %v1709 = vrot.slane %v1665, 2
      %v1710 = vrot.slane %v1665, 4
      %v1711 = vrot.slane %v1665, 6
      %v1712 = vrot.slane %v1666, 2
      %v1713 = vrot.slane %v1666, 4
      %v1714 = vrot.slane %v1666, 6
      %v1715 = vrot.slane %v1667, 2
      %v1716 = vrot.slane %v1667, 4
      %v1717 = vrot.slane %v1667, 6
      %v1718 = vrot.slane %v1668, 2
      %v1719 = vrot.slane %v1668, 4
      %v1720 = vrot.slane %v1668, 6
      %v1721 = vrot.slane %v1669, 2
      %v1722 = vrot.slane %v1669, 4
      %v1723 = vrot.slane %v1669, 6
      %v1724 = vrot.slane %v1670, 2
      %v1725 = vrot.slane %v1670, 4
      %v1726 = vrot.slane %v1670, 6
      %v1727 = vrot.slane %v1671, 2
      %v1728 = vrot.slane %v1671, 4
      %v1729 = vrot.slane %v1671, 6
      %v1730 = vrot.slane %v1672, 2
      %v1731 = vrot.slane %v1672, 4
      %v1732 = vrot.slane %v1672, 6
      %v1733 = vrot.slane %v1673, 2
      %v1734 = vrot.slane %v1673, 4
      %v1735 = vrot.slane %v1673, 6
      %v1736 = vrot.slane %v1674, 2
      %v1737 = vrot.slane %v1674, 4
      %v1738 = vrot.slane %v1674, 6
      %vm1787 = vcmask 517120
      %v1788 = vsel %vm1787, %v1659, -inf
      %v1789 = vrot.slane %v1788, 4
      %v1790 = vmax.f32 %v1788, %v1789
      %v1791 = vrot.slane %v1790, 2
      %v1792 = vmax.f32 %v1790, %v1791
      %v1793 = vrot.slane %v1792, 1
      %v1794 = vmax.f32 %v1792, %v1793
      %v1795 = vsel %vm1787, %v1691, -inf
      %v1796 = vrot.slane %v1795, 4
      %v1797 = vmax.f32 %v1795, %v1796
      %v1798 = vrot.slane %v1797, 2
      %v1799 = vmax.f32 %v1797, %v1798
      %v1800 = vrot.slane %v1799, 1
      %v1801 = vmax.f32 %v1799, %v1800
      %v1802 = vsel %vm1787, %v1692, -inf
      %v1803 = vrot.slane %v1802, 4
      %v1804 = vmax.f32 %v1802, %v1803
      %v1805 = vrot.slane %v1804, 2
      %v1806 = vmax.f32 %v1804, %v1805
      %v1807 = vrot.slane %v1806, 1
      %v1808 = vmax.f32 %v1806, %v1807
      %v1809 = vsel %vm1787, %v1693, -inf
      %v1810 = vrot.slane %v1809, 4
      %v1811 = vmax.f32 %v1809, %v1810
      %v1812 = vrot.slane %v1811, 2
      %v1813 = vmax.f32 %v1811, %v1812
      %v1814 = vrot.slane %v1813, 1
      %v1815 = vmax.f32 %v1813, %v1814
      %v1816 = vsel %vm1787, %v1660, -inf
      %v1817 = vrot.slane %v1816, 4
      %v1818 = vmax.f32 %v1816, %v1817
      %v1819 = vrot.slane %v1818, 2
      %v1820 = vmax.f32 %v1818, %v1819
      %v1821 = vrot.slane %v1820, 1
      %v1822 = vmax.f32 %v1820, %v1821
      %v1823 = vsel %vm1787, %v1694, -inf
      %v1824 = vrot.slane %v1823, 4
      %v1825 = vmax.f32 %v1823, %v1824
      %v1826 = vrot.slane %v1825, 2
      %v1827 = vmax.f32 %v1825, %v1826
      %v1828 = vrot.slane %v1827, 1
      %v1829 = vmax.f32 %v1827, %v1828
      %v1830 = vsel %vm1787, %v1695, -inf
      %v1831 = vrot.slane %v1830, 4
      %v1832 = vmax.f32 %v1830, %v1831
      %v1833 = vrot.slane %v1832, 2
      %v1834 = vmax.f32 %v1832, %v1833
      %v1835 = vrot.slane %v1834, 1
      %v1836 = vmax.f32 %v1834, %v1835
      %v1837 = vsel %vm1787, %v1696, -inf
      %v1838 = vrot.slane %v1837, 4
      %v1839 = vmax.f32 %v1837, %v1838
      %v1840 = vrot.slane %v1839, 2
      %v1841 = vmax.f32 %v1839, %v1840
      %v1842 = vrot.slane %v1841, 1
      %v1843 = vmax.f32 %v1841, %v1842
      %v1844 = vsel %vm1787, %v1661, -inf
      %v1845 = vrot.slane %v1844, 4
      %v1846 = vmax.f32 %v1844, %v1845
      %v1847 = vrot.slane %v1846, 2
      %v1848 = vmax.f32 %v1846, %v1847
      %v1849 = vrot.slane %v1848, 1
      %v1850 = vmax.f32 %v1848, %v1849
      %v1851 = vsel %vm1787, %v1697, -inf
      %v1852 = vrot.slane %v1851, 4
      %v1853 = vmax.f32 %v1851, %v1852
      %v1854 = vrot.slane %v1853, 2
      %v1855 = vmax.f32 %v1853, %v1854
      %v1856 = vrot.slane %v1855, 1
      %v1857 = vmax.f32 %v1855, %v1856
      %v1858 = vsel %vm1787, %v1698, -inf
      %v1859 = vrot.slane %v1858, 4
      %v1860 = vmax.f32 %v1858, %v1859
      %v1861 = vrot.slane %v1860, 2
      %v1862 = vmax.f32 %v1860, %v1861
      %v1863 = vrot.slane %v1862, 1
      %v1864 = vmax.f32 %v1862, %v1863
      %v1865 = vsel %vm1787, %v1699, -inf
      %v1866 = vrot.slane %v1865, 4
      %v1867 = vmax.f32 %v1865, %v1866
      %v1868 = vrot.slane %v1867, 2
      %v1869 = vmax.f32 %v1867, %v1868
      %v1870 = vrot.slane %v1869, 1
      %v1871 = vmax.f32 %v1869, %v1870
      %v1872 = vsel %vm1787, %v1662, -inf
      %v1873 = vrot.slane %v1872, 4
      %v1874 = vmax.f32 %v1872, %v1873
      %v1875 = vrot.slane %v1874, 2
      %v1876 = vmax.f32 %v1874, %v1875
      %v1877 = vrot.slane %v1876, 1
      %v1878 = vmax.f32 %v1876, %v1877
      %v1879 = vsel %vm1787, %v1700, -inf
      %v1880 = vrot.slane %v1879, 4
      %v1881 = vmax.f32 %v1879, %v1880
      %v1882 = vrot.slane %v1881, 2
      %v1883 = vmax.f32 %v1881, %v1882
      %v1884 = vrot.slane %v1883, 1
      %v1885 = vmax.f32 %v1883, %v1884
      %v1886 = vsel %vm1787, %v1701, -inf
      %v1887 = vrot.slane %v1886, 4
      %v1888 = vmax.f32 %v1886, %v1887
      %v1889 = vrot.slane %v1888, 2
      %v1890 = vmax.f32 %v1888, %v1889
      %v1891 = vrot.slane %v1890, 1
      %v1892 = vmax.f32 %v1890, %v1891
      %v1893 = vsel %vm1787, %v1702, -inf
      %v1894 = vrot.slane %v1893, 4
      %v1895 = vmax.f32 %v1893, %v1894
      %v1896 = vrot.slane %v1895, 2
      %v1897 = vmax.f32 %v1895, %v1896
      %v1898 = vrot.slane %v1897, 1
      %v1899 = vmax.f32 %v1897, %v1898
      %v1900 = vsel %vm1787, %v1663, -inf
      %v1901 = vrot.slane %v1900, 4
      %v1902 = vmax.f32 %v1900, %v1901
      %v1903 = vrot.slane %v1902, 2
      %v1904 = vmax.f32 %v1902, %v1903
      %v1905 = vrot.slane %v1904, 1
      %v1906 = vmax.f32 %v1904, %v1905
      %v1907 = vsel %vm1787, %v1703, -inf
      %v1908 = vrot.slane %v1907, 4
      %v1909 = vmax.f32 %v1907, %v1908
      %v1910 = vrot.slane %v1909, 2
      %v1911 = vmax.f32 %v1909, %v1910
      %v1912 = vrot.slane %v1911, 1
      %v1913 = vmax.f32 %v1911, %v1912
      %v1914 = vsel %vm1787, %v1704, -inf
      %v1915 = vrot.slane %v1914, 4
      %v1916 = vmax.f32 %v1914, %v1915
      %v1917 = vrot.slane %v1916, 2
      %v1918 = vmax.f32 %v1916, %v1917
      %v1919 = vrot.slane %v1918, 1
      %v1920 = vmax.f32 %v1918, %v1919
      %v1921 = vsel %vm1787, %v1705, -inf
      %v1922 = vrot.slane %v1921, 4
      %v1923 = vmax.f32 %v1921, %v1922
      %v1924 = vrot.slane %v1923, 2
      %v1925 = vmax.f32 %v1923, %v1924
      %v1926 = vrot.slane %v1925, 1
      %v1927 = vmax.f32 %v1925, %v1926
      %v1928 = vsel %vm1787, %v1664, -inf
      %v1929 = vrot.slane %v1928, 4
      %v1930 = vmax.f32 %v1928, %v1929
      %v1931 = vrot.slane %v1930, 2
      %v1932 = vmax.f32 %v1930, %v1931
      %v1933 = vrot.slane %v1932, 1
      %v1934 = vmax.f32 %v1932, %v1933
      %v1935 = vsel %vm1787, %v1706, -inf
      %v1936 = vrot.slane %v1935, 4
      %v1937 = vmax.f32 %v1935, %v1936
      %v1938 = vrot.slane %v1937, 2
      %v1939 = vmax.f32 %v1937, %v1938
      %v1940 = vrot.slane %v1939, 1
      %v1941 = vmax.f32 %v1939, %v1940
      %v1942 = vsel %vm1787, %v1707, -inf
      %v1943 = vrot.slane %v1942, 4
      %v1944 = vmax.f32 %v1942, %v1943
      %v1945 = vrot.slane %v1944, 2
      %v1946 = vmax.f32 %v1944, %v1945
      %v1947 = vrot.slane %v1946, 1
      %v1948 = vmax.f32 %v1946, %v1947
      %v1949 = vsel %vm1787, %v1708, -inf
      %v1950 = vrot.slane %v1949, 4
      %v1951 = vmax.f32 %v1949, %v1950
      %v1952 = vrot.slane %v1951, 2
      %v1953 = vmax.f32 %v1951, %v1952
      %v1954 = vrot.slane %v1953, 1
      %v1955 = vmax.f32 %v1953, %v1954
      %v1956 = vsel %vm1787, %v1665, -inf
      %v1957 = vrot.slane %v1956, 4
      %v1958 = vmax.f32 %v1956, %v1957
      %v1959 = vrot.slane %v1958, 2
      %v1960 = vmax.f32 %v1958, %v1959
      %v1961 = vrot.slane %v1960, 1
      %v1962 = vmax.f32 %v1960, %v1961
      %v1963 = vsel %vm1787, %v1709, -inf
      %v1964 = vrot.slane %v1963, 4
      %v1965 = vmax.f32 %v1963, %v1964
      %v1966 = vrot.slane %v1965, 2
      %v1967 = vmax.f32 %v1965, %v1966
      %v1968 = vrot.slane %v1967, 1
      %v1969 = vmax.f32 %v1967, %v1968
      %v1970 = vsel %vm1787, %v1710, -inf
      %v1971 = vrot.slane %v1970, 4
      %v1972 = vmax.f32 %v1970, %v1971
      %v1973 = vrot.slane %v1972, 2
      %v1974 = vmax.f32 %v1972, %v1973
      %v1975 = vrot.slane %v1974, 1
      %v1976 = vmax.f32 %v1974, %v1975
      %v1977 = vsel %vm1787, %v1711, -inf
      %v1978 = vrot.slane %v1977, 4
      %v1979 = vmax.f32 %v1977, %v1978
      %v1980 = vrot.slane %v1979, 2
      %v1981 = vmax.f32 %v1979, %v1980
      %v1982 = vrot.slane %v1981, 1
      %v1983 = vmax.f32 %v1981, %v1982
      %v1984 = vsel %vm1787, %v1666, -inf
      %v1985 = vrot.slane %v1984, 4
      %v1986 = vmax.f32 %v1984, %v1985
      %v1987 = vrot.slane %v1986, 2
      %v1988 = vmax.f32 %v1986, %v1987
      %v1989 = vrot.slane %v1988, 1
      %v1990 = vmax.f32 %v1988, %v1989
      %v1991 = vsel %vm1787, %v1712, -inf
      %v1992 = vrot.slane %v1991, 4
      %v1993 = vmax.f32 %v1991, %v1992
      %v1994 = vrot.slane %v1993, 2
      %v1995 = vmax.f32 %v1993, %v1994
      %v1996 = vrot.slane %v1995, 1
      %v1997 = vmax.f32 %v1995, %v1996
      %v1998 = vsel %vm1787, %v1713, -inf
      %v1999 = vrot.slane %v1998, 4
      %v2000 = vmax.f32 %v1998, %v1999
      %v2001 = vrot.slane %v2000, 2
      %v2002 = vmax.f32 %v2000, %v2001
      %v2003 = vrot.slane %v2002, 1
      %v2004 = vmax.f32 %v2002, %v2003
      %v2005 = vsel %vm1787, %v1714, -inf
      %v2006 = vrot.slane %v2005, 4
      %v2007 = vmax.f32 %v2005, %v2006
      %v2008 = vrot.slane %v2007, 2
      %v2009 = vmax.f32 %v2007, %v2008
      %v2010 = vrot.slane %v2009, 1
      %v2011 = vmax.f32 %v2009, %v2010
      %v2012 = vsel %vm1787, %v1667, -inf
      %v2013 = vrot.slane %v2012, 4
      %v2014 = vmax.f32 %v2012, %v2013
      %v2015 = vrot.slane %v2014, 2
      %v2016 = vmax.f32 %v2014, %v2015
      %v2017 = vrot.slane %v2016, 1
      %v2018 = vmax.f32 %v2016, %v2017
      %v2019 = vsel %vm1787, %v1715, -inf
      %v2020 = vrot.slane %v2019, 4
      %v2021 = vmax.f32 %v2019, %v2020
      %v2022 = vrot.slane %v2021, 2
      %v2023 = vmax.f32 %v2021, %v2022
      %v2024 = vrot.slane %v2023, 1
      %v2025 = vmax.f32 %v2023, %v2024
      %v2026 = vsel %vm1787, %v1716, -inf
      %v2027 = vrot.slane %v2026, 4
      %v2028 = vmax.f32 %v2026, %v2027
      %v2029 = vrot.slane %v2028, 2
      %v2030 = vmax.f32 %v2028, %v2029
      %v2031 = vrot.slane %v2030, 1
      %v2032 = vmax.f32 %v2030, %v2031
      %v2033 = vsel %vm1787, %v1717, -inf
      %v2034 = vrot.slane %v2033, 4
      %v2035 = vmax.f32 %v2033, %v2034
      %v2036 = vrot.slane %v2035, 2
      %v2037 = vmax.f32 %v2035, %v2036
      %v2038 = vrot.slane %v2037, 1
      %v2039 = vmax.f32 %v2037, %v2038
      %v2040 = vsel %vm1787, %v1668, -inf
      %v2041 = vrot.slane %v2040, 4
      %v2042 = vmax.f32 %v2040, %v2041
      %v2043 = vrot.slane %v2042, 2
      %v2044 = vmax.f32 %v2042, %v2043
      %v2045 = vrot.slane %v2044, 1
      %v2046 = vmax.f32 %v2044, %v2045
      %v2047 = vsel %vm1787, %v1718, -inf
      %v2048 = vrot.slane %v2047, 4
      %v2049 = vmax.f32 %v2047, %v2048
      %v2050 = vrot.slane %v2049, 2
      %v2051 = vmax.f32 %v2049, %v2050
      %v2052 = vrot.slane %v2051, 1
      %v2053 = vmax.f32 %v2051, %v2052
      %v2054 = vsel %vm1787, %v1719, -inf
      %v2055 = vrot.slane %v2054, 4
      %v2056 = vmax.f32 %v2054, %v2055
      %v2057 = vrot.slane %v2056, 2
      %v2058 = vmax.f32 %v2056, %v2057
      %v2059 = vrot.slane %v2058, 1
      %v2060 = vmax.f32 %v2058, %v2059
      %v2061 = vsel %vm1787, %v1720, -inf
      %v2062 = vrot.slane %v2061, 4
      %v2063 = vmax.f32 %v2061, %v2062
      %v2064 = vrot.slane %v2063, 2
      %v2065 = vmax.f32 %v2063, %v2064
      %v2066 = vrot.slane %v2065, 1
      %v2067 = vmax.f32 %v2065, %v2066
      %v2068 = vsel %vm1787, %v1669, -inf
      %v2069 = vrot.slane %v2068, 4
      %v2070 = vmax.f32 %v2068, %v2069
      %v2071 = vrot.slane %v2070, 2
      %v2072 = vmax.f32 %v2070, %v2071
      %v2073 = vrot.slane %v2072, 1
      %v2074 = vmax.f32 %v2072, %v2073
      %v2075 = vsel %vm1787, %v1721, -inf
      %v2076 = vrot.slane %v2075, 4
      %v2077 = vmax.f32 %v2075, %v2076
      %v2078 = vrot.slane %v2077, 2
      %v2079 = vmax.f32 %v2077, %v2078
      %v2080 = vrot.slane %v2079, 1
      %v2081 = vmax.f32 %v2079, %v2080
      %v2082 = vsel %vm1787, %v1722, -inf
      %v2083 = vrot.slane %v2082, 4
      %v2084 = vmax.f32 %v2082, %v2083
      %v2085 = vrot.slane %v2084, 2
      %v2086 = vmax.f32 %v2084, %v2085
      %v2087 = vrot.slane %v2086, 1
      %v2088 = vmax.f32 %v2086, %v2087
      %v2089 = vsel %vm1787, %v1723, -inf
      %v2090 = vrot.slane %v2089, 4
      %v2091 = vmax.f32 %v2089, %v2090
      %v2092 = vrot.slane %v2091, 2
      %v2093 = vmax.f32 %v2091, %v2092
      %v2094 = vrot.slane %v2093, 1
      %v2095 = vmax.f32 %v2093, %v2094
      %v2096 = vsel %vm1787, %v1670, -inf
      %v2097 = vrot.slane %v2096, 4
      %v2098 = vmax.f32 %v2096, %v2097
      %v2099 = vrot.slane %v2098, 2
      %v2100 = vmax.f32 %v2098, %v2099
      %v2101 = vrot.slane %v2100, 1
      %v2102 = vmax.f32 %v2100, %v2101
      %v2103 = vsel %vm1787, %v1724, -inf
      %v2104 = vrot.slane %v2103, 4
      %v2105 = vmax.f32 %v2103, %v2104
      %v2106 = vrot.slane %v2105, 2
      %v2107 = vmax.f32 %v2105, %v2106
      %v2108 = vrot.slane %v2107, 1
      %v2109 = vmax.f32 %v2107, %v2108
      %v2110 = vsel %vm1787, %v1725, -inf
      %v2111 = vrot.slane %v2110, 4
      %v2112 = vmax.f32 %v2110, %v2111
      %v2113 = vrot.slane %v2112, 2
      %v2114 = vmax.f32 %v2112, %v2113
      %v2115 = vrot.slane %v2114, 1
      %v2116 = vmax.f32 %v2114, %v2115
      %v2117 = vsel %vm1787, %v1726, -inf
      %v2118 = vrot.slane %v2117, 4
      %v2119 = vmax.f32 %v2117, %v2118
      %v2120 = vrot.slane %v2119, 2
      %v2121 = vmax.f32 %v2119, %v2120
      %v2122 = vrot.slane %v2121, 1
      %v2123 = vmax.f32 %v2121, %v2122
      %v2124 = vsel %vm1787, %v1671, -inf
      %v2125 = vrot.slane %v2124, 4
      %v2126 = vmax.f32 %v2124, %v2125
      %v2127 = vrot.slane %v2126, 2
      %v2128 = vmax.f32 %v2126, %v2127
      %v2129 = vrot.slane %v2128, 1
      %v2130 = vmax.f32 %v2128, %v2129
      %v2131 = vsel %vm1787, %v1727, -inf
      %v2132 = vrot.slane %v2131, 4
      %v2133 = vmax.f32 %v2131, %v2132
      %v2134 = vrot.slane %v2133, 2
      %v2135 = vmax.f32 %v2133, %v2134
      %v2136 = vrot.slane %v2135, 1
      %v2137 = vmax.f32 %v2135, %v2136
      %v2138 = vsel %vm1787, %v1728, -inf
      %v2139 = vrot.slane %v2138, 4
      %v2140 = vmax.f32 %v2138, %v2139
      %v2141 = vrot.slane %v2140, 2
      %v2142 = vmax.f32 %v2140, %v2141
      %v2143 = vrot.slane %v2142, 1
      %v2144 = vmax.f32 %v2142, %v2143
      %v2145 = vsel %vm1787, %v1729, -inf
      %v2146 = vrot.slane %v2145, 4
      %v2147 = vmax.f32 %v2145, %v2146
      %v2148 = vrot.slane %v2147, 2
      %v2149 = vmax.f32 %v2147, %v2148
      %v2150 = vrot.slane %v2149, 1
      %v2151 = vmax.f32 %v2149, %v2150
      %v2152 = vsel %vm1787, %v1672, -inf
      %v2153 = vrot.slane %v2152, 4
      %v2154 = vmax.f32 %v2152, %v2153
      %v2155 = vrot.slane %v2154, 2
      %v2156 = vmax.f32 %v2154, %v2155
      %v2157 = vrot.slane %v2156, 1
      %v2158 = vmax.f32 %v2156, %v2157
      %v2159 = vsel %vm1787, %v1730, -inf
      %v2160 = vrot.slane %v2159, 4
      %v2161 = vmax.f32 %v2159, %v2160
      %v2162 = vrot.slane %v2161, 2
      %v2163 = vmax.f32 %v2161, %v2162
      %v2164 = vrot.slane %v2163, 1
      %v2165 = vmax.f32 %v2163, %v2164
      %v2166 = vsel %vm1787, %v1731, -inf
      %v2167 = vrot.slane %v2166, 4
      %v2168 = vmax.f32 %v2166, %v2167
      %v2169 = vrot.slane %v2168, 2
      %v2170 = vmax.f32 %v2168, %v2169
      %v2171 = vrot.slane %v2170, 1
      %v2172 = vmax.f32 %v2170, %v2171
      %v2173 = vsel %vm1787, %v1732, -inf
      %v2174 = vrot.slane %v2173, 4
      %v2175 = vmax.f32 %v2173, %v2174
      %v2176 = vrot.slane %v2175, 2
      %v2177 = vmax.f32 %v2175, %v2176
      %v2178 = vrot.slane %v2177, 1
      %v2179 = vmax.f32 %v2177, %v2178
      %v2180 = vsel %vm1787, %v1673, -inf
      %v2181 = vrot.slane %v2180, 4
      %v2182 = vmax.f32 %v2180, %v2181
      %v2183 = vrot.slane %v2182, 2
      %v2184 = vmax.f32 %v2182, %v2183
      %v2185 = vrot.slane %v2184, 1
      %v2186 = vmax.f32 %v2184, %v2185
      %v2187 = vsel %vm1787, %v1733, -inf
      %v2188 = vrot.slane %v2187, 4
      %v2189 = vmax.f32 %v2187, %v2188
      %v2190 = vrot.slane %v2189, 2
      %v2191 = vmax.f32 %v2189, %v2190
      %v2192 = vrot.slane %v2191, 1
      %v2193 = vmax.f32 %v2191, %v2192
      %v2194 = vsel %vm1787, %v1734, -inf
      %v2195 = vrot.slane %v2194, 4
      %v2196 = vmax.f32 %v2194, %v2195
      %v2197 = vrot.slane %v2196, 2
      %v2198 = vmax.f32 %v2196, %v2197
      %v2199 = vrot.slane %v2198, 1
      %v2200 = vmax.f32 %v2198, %v2199
      %v2201 = vsel %vm1787, %v1735, -inf
      %v2202 = vrot.slane %v2201, 4
      %v2203 = vmax.f32 %v2201, %v2202
      %v2204 = vrot.slane %v2203, 2
      %v2205 = vmax.f32 %v2203, %v2204
      %v2206 = vrot.slane %v2205, 1
      %v2207 = vmax.f32 %v2205, %v2206
      %v2208 = vsel %vm1787, %v1674, -inf
      %v2209 = vrot.slane %v2208, 4
      %v2210 = vmax.f32 %v2208, %v2209
      %v2211 = vrot.slane %v2210, 2
      %v2212 = vmax.f32 %v2210, %v2211
      %v2213 = vrot.slane %v2212, 1
      %v2214 = vmax.f32 %v2212, %v2213
      %v2215 = vsel %vm1787, %v1736, -inf
      %v2216 = vrot.slane %v2215, 4
      %v2217 = vmax.f32 %v2215, %v2216
      %v2218 = vrot.slane %v2217, 2
      %v2219 = vmax.f32 %v2217, %v2218
      %v2220 = vrot.slane %v2219, 1
      %v2221 = vmax.f32 %v2219, %v2220
      %v2222 = vsel %vm1787, %v1737, -inf
      %v2223 = vrot.slane %v2222, 4
      %v2224 = vmax.f32 %v2222, %v2223
      %v2225 = vrot.slane %v2224, 2
      %v2226 = vmax.f32 %v2224, %v2225
      %v2227 = vrot.slane %v2226, 1
      %v2228 = vmax.f32 %v2226, %v2227
      %v2229 = vsel %vm1787, %v1738, -inf
      %v2230 = vrot.slane %v2229, 4
      %v2231 = vmax.f32 %v2229, %v2230
      %v2232 = vrot.slane %v2231, 2
      %v2233 = vmax.f32 %v2231, %v2232
      %v2234 = vrot.slane %v2233, 1
      %v2235 = vmax.f32 %v2233, %v2234
      %vm2236 = vcmask 523264
      %v2237 = vsel %vm2236, %v1794, -inf
      %v2238 = vsel %vm2236, %v1850, -inf
      %v2239 = vmax.f32 %v2237, %v2238
      %v2240 = vsel %vm2236, %v1801, -inf
      %v2241 = vsel %vm2236, %v1857, -inf
      %v2242 = vmax.f32 %v2240, %v2241
      %v2243 = vsel %vm2236, %v1808, -inf
      %v2244 = vsel %vm2236, %v1864, -inf
      %v2245 = vmax.f32 %v2243, %v2244
      %v2246 = vsel %vm2236, %v1815, -inf
      %v2247 = vsel %vm2236, %v1871, -inf
      %v2248 = vmax.f32 %v2246, %v2247
      %v2249 = vsel %vm2236, %v1822, -inf
      %v2250 = vsel %vm2236, %v1878, -inf
      %v2251 = vmax.f32 %v2249, %v2250
      %v2252 = vsel %vm2236, %v1829, -inf
      %v2253 = vsel %vm2236, %v1885, -inf
      %v2254 = vmax.f32 %v2252, %v2253
      %v2255 = vsel %vm2236, %v1836, -inf
      %v2256 = vsel %vm2236, %v1892, -inf
      %v2257 = vmax.f32 %v2255, %v2256
      %v2258 = vsel %vm2236, %v1843, -inf
      %v2259 = vsel %vm2236, %v1899, -inf
      %v2260 = vmax.f32 %v2258, %v2259
      %v2261 = vsel %vm2236, %v1906, -inf
      %v2262 = vsel %vm2236, %v1962, -inf
      %v2263 = vmax.f32 %v2261, %v2262
      %v2264 = vsel %vm2236, %v1913, -inf
      %v2265 = vsel %vm2236, %v1969, -inf
      %v2266 = vmax.f32 %v2264, %v2265
      %v2267 = vsel %vm2236, %v1920, -inf
      %v2268 = vsel %vm2236, %v1976, -inf
      %v2269 = vmax.f32 %v2267, %v2268
      %v2270 = vsel %vm2236, %v1927, -inf
      %v2271 = vsel %vm2236, %v1983, -inf
      %v2272 = vmax.f32 %v2270, %v2271
      %v2273 = vsel %vm2236, %v1934, -inf
      %v2274 = vsel %vm2236, %v1990, -inf
      %v2275 = vmax.f32 %v2273, %v2274
      %v2276 = vsel %vm2236, %v1941, -inf
      %v2277 = vsel %vm2236, %v1997, -inf
      %v2278 = vmax.f32 %v2276, %v2277
      %v2279 = vsel %vm2236, %v1948, -inf
      %v2280 = vsel %vm2236, %v2004, -inf
      %v2281 = vmax.f32 %v2279, %v2280
      %v2282 = vsel %vm2236, %v1955, -inf
      %v2283 = vsel %vm2236, %v2011, -inf
      %v2284 = vmax.f32 %v2282, %v2283
      %v2285 = vsel %vm2236, %v2018, -inf
      %v2286 = vsel %vm2236, %v2074, -inf
      %v2287 = vmax.f32 %v2285, %v2286
      %v2288 = vsel %vm2236, %v2025, -inf
      %v2289 = vsel %vm2236, %v2081, -inf
      %v2290 = vmax.f32 %v2288, %v2289
      %v2291 = vsel %vm2236, %v2032, -inf
      %v2292 = vsel %vm2236, %v2088, -inf
      %v2293 = vmax.f32 %v2291, %v2292
      %v2294 = vsel %vm2236, %v2039, -inf
      %v2295 = vsel %vm2236, %v2095, -inf
      %v2296 = vmax.f32 %v2294, %v2295
      %v2297 = vsel %vm2236, %v2046, -inf
      %v2298 = vsel %vm2236, %v2102, -inf
      %v2299 = vmax.f32 %v2297, %v2298
      %v2300 = vsel %vm2236, %v2053, -inf
      %v2301 = vsel %vm2236, %v2109, -inf
      %v2302 = vmax.f32 %v2300, %v2301
      %v2303 = vsel %vm2236, %v2060, -inf
      %v2304 = vsel %vm2236, %v2116, -inf
      %v2305 = vmax.f32 %v2303, %v2304
      %v2306 = vsel %vm2236, %v2067, -inf
      %v2307 = vsel %vm2236, %v2123, -inf
      %v2308 = vmax.f32 %v2306, %v2307
      %v2309 = vsel %vm2236, %v2130, -inf
      %v2310 = vsel %vm2236, %v2186, -inf
      %v2311 = vmax.f32 %v2309, %v2310
      %v2312 = vsel %vm2236, %v2137, -inf
      %v2313 = vsel %vm2236, %v2193, -inf
      %v2314 = vmax.f32 %v2312, %v2313
      %v2315 = vsel %vm2236, %v2144, -inf
      %v2316 = vsel %vm2236, %v2200, -inf
      %v2317 = vmax.f32 %v2315, %v2316
      %v2318 = vsel %vm2236, %v2151, -inf
      %v2319 = vsel %vm2236, %v2207, -inf
      %v2320 = vmax.f32 %v2318, %v2319
      %v2321 = vsel %vm2236, %v2158, -inf
      %v2322 = vsel %vm2236, %v2214, -inf
      %v2323 = vmax.f32 %v2321, %v2322
      %v2324 = vsel %vm2236, %v2165, -inf
      %v2325 = vsel %vm2236, %v2221, -inf
      %v2326 = vmax.f32 %v2324, %v2325
      %v2327 = vsel %vm2236, %v2172, -inf
      %v2328 = vsel %vm2236, %v2228, -inf
      %v2329 = vmax.f32 %v2327, %v2328
      %v2330 = vsel %vm2236, %v2179, -inf
      %v2331 = vsel %vm2236, %v2235, -inf
      %v2332 = vmax.f32 %v2330, %v2331
      %v2333 = vld [vmem:[%s2] sm:$0x1]
      %v2335 = vperm.slane %v2333, 0
      %v2337 = vadd.f32 %v2239, %v2335
      %v2338 = vadd.f32 %v2242, %v2335
      %v2339 = vadd.f32 %v2245, %v2335
      %v2340 = vadd.f32 %v2248, %v2335
      %v2341 = vadd.f32 %v2251, %v2335
      %v2342 = vadd.f32 %v2254, %v2335
      %v2343 = vadd.f32 %v2257, %v2335
      %v2344 = vadd.f32 %v2260, %v2335
      %v2345 = vadd.f32 %v2263, %v2335
      %v2346 = vadd.f32 %v2266, %v2335
      %v2347 = vadd.f32 %v2269, %v2335
      %v2348 = vadd.f32 %v2272, %v2335
      %v2349 = vadd.f32 %v2275, %v2335
      %v2350 = vadd.f32 %v2278, %v2335
      %v2351 = vadd.f32 %v2281, %v2335
      %v2352 = vadd.f32 %v2284, %v2335
      %v2353 = vadd.f32 %v2287, %v2335
      %v2354 = vadd.f32 %v2290, %v2335
      %v2355 = vadd.f32 %v2293, %v2335
      %v2356 = vadd.f32 %v2296, %v2335
      %v2357 = vadd.f32 %v2299, %v2335
      %v2358 = vadd.f32 %v2302, %v2335
      %v2359 = vadd.f32 %v2305, %v2335
      %v2360 = vadd.f32 %v2308, %v2335
      %v2361 = vadd.f32 %v2311, %v2335
      %v2362 = vadd.f32 %v2314, %v2335
      %v2363 = vadd.f32 %v2317, %v2335
      %v2364 = vadd.f32 %v2320, %v2335
      %v2365 = vadd.f32 %v2323, %v2335
      %v2366 = vadd.f32 %v2326, %v2335
      %v2367 = vadd.f32 %v2329, %v2335
      %v2368 = vadd.f32 %v2332, %v2335
      %v2369 = vmax.f32 %v2337, 0.0
      %v2370 = vmax.f32 %v2338, 0.0
      %v2371 = vmax.f32 %v2339, 0.0
      %v2372 = vmax.f32 %v2340, 0.0
      %v2373 = vmax.f32 %v2341, 0.0
      %v2374 = vmax.f32 %v2342, 0.0
      %v2375 = vmax.f32 %v2343, 0.0
      %v2376 = vmax.f32 %v2344, 0.0
      %v2377 = vmax.f32 %v2345, 0.0
      %v2378 = vmax.f32 %v2346, 0.0
      %v2379 = vmax.f32 %v2347, 0.0
      %v2380 = vmax.f32 %v2348, 0.0
      %v2381 = vmax.f32 %v2349, 0.0
      %v2382 = vmax.f32 %v2350, 0.0
      %v2383 = vmax.f32 %v2351, 0.0
      %v2384 = vmax.f32 %v2352, 0.0
      %v2385 = vmax.f32 %v2353, 0.0
      %v2386 = vmax.f32 %v2354, 0.0
      %v2387 = vmax.f32 %v2355, 0.0
      %v2388 = vmax.f32 %v2356, 0.0
      %v2389 = vmax.f32 %v2357, 0.0
      %v2390 = vmax.f32 %v2358, 0.0
      %v2391 = vmax.f32 %v2359, 0.0
      %v2392 = vmax.f32 %v2360, 0.0
      %v2393 = vmax.f32 %v2361, 0.0
      %v2394 = vmax.f32 %v2362, 0.0
      %v2395 = vmax.f32 %v2363, 0.0
      %v2396 = vmax.f32 %v2364, 0.0
      %v2397 = vmax.f32 %v2365, 0.0
      %v2398 = vmax.f32 %v2366, 0.0
      %v2399 = vmax.f32 %v2367, 0.0
      %v2400 = vmax.f32 %v2368, 0.0
      %v2405 = vrot.slane %v2377, 7
      %vm2406 = vcmask 1041409
      %v2407 = vsel %vm2406, %v2405, %v2369
      %v2408 = vrot.slane %v2385, 6
      %vm2409 = vcmask 1042434
      %v2410 = vsel %vm2409, %v2408, %v2407
      %v2411 = vrot.slane %v2393, 5
      %vm2412 = vcmask 1043459
      %v2413 = vsel %vm2412, %v2411, %v2410
      %v2419 = vrot.slane %v2378, 7
      %v2420 = vsel %vm2406, %v2419, %v2370
      %v2421 = vrot.slane %v2386, 6
      %v2422 = vsel %vm2409, %v2421, %v2420
      %v2423 = vrot.slane %v2394, 5
      %v2424 = vsel %vm2412, %v2423, %v2422
      %2425 = vrot.lane.b32.xlu0 %v2424, 64
      %v2426 = vpop.permute.xlu0 %2425
      %v2432 = vrot.slane %v2379, 7
      %v2433 = vsel %vm2406, %v2432, %v2371
      %v2434 = vrot.slane %v2387, 6
      %v2435 = vsel %vm2409, %v2434, %v2433
      %v2436 = vrot.slane %v2395, 5
      %v2437 = vsel %vm2412, %v2436, %v2435
      %v2443 = vrot.slane %v2380, 7
      %v2444 = vsel %vm2406, %v2443, %v2372
      %v2445 = vrot.slane %v2388, 6
      %v2446 = vsel %vm2409, %v2445, %v2444
      %v2447 = vrot.slane %v2396, 5
      %v2448 = vsel %vm2412, %v2447, %v2446
      %2449 = vrot.lane.b32.xlu0 %v2448, 64
      %v2450 = vpop.permute.xlu0 %2449
      %v2456 = vrot.slane %v2381, 7
      %v2457 = vsel %vm2406, %v2456, %v2373
      %v2458 = vrot.slane %v2389, 6
      %v2459 = vsel %vm2409, %v2458, %v2457
      %v2460 = vrot.slane %v2397, 5
      %v2461 = vsel %vm2412, %v2460, %v2459
      %v2467 = vrot.slane %v2382, 7
      %v2468 = vsel %vm2406, %v2467, %v2374
      %v2469 = vrot.slane %v2390, 6
      %v2470 = vsel %vm2409, %v2469, %v2468
      %v2471 = vrot.slane %v2398, 5
      %v2472 = vsel %vm2412, %v2471, %v2470
      %2473 = vrot.lane.b32.xlu0 %v2472, 64
      %v2474 = vpop.permute.xlu0 %2473
      %v2480 = vrot.slane %v2383, 7
      %v2481 = vsel %vm2406, %v2480, %v2375
      %v2482 = vrot.slane %v2391, 6
      %v2483 = vsel %vm2409, %v2482, %v2481
      %v2484 = vrot.slane %v2399, 5
      %v2485 = vsel %vm2412, %v2484, %v2483
      %v2491 = vrot.slane %v2384, 7
      %v2492 = vsel %vm2406, %v2491, %v2376
      %v2493 = vrot.slane %v2392, 6
      %v2494 = vsel %vm2409, %v2493, %v2492
      %v2495 = vrot.slane %v2400, 5
      %v2496 = vsel %vm2412, %v2495, %v2494
      %2497 = vrot.lane.b32.xlu0 %v2496, 64
      %v2498 = vpop.permute.xlu0 %2497
      %v2500 = vsel %vm2236, %v2413, %v2426
      %v2501 = vsel %vm2236, %v2437, %v2450
      %v2502 = vsel %vm2236, %v2461, %v2474
      %v2503 = vsel %vm2236, %v2485, %v2498
      %v2508 = vrot.slane %v2501, 4
      %v2509 = vrot.slane %v2503, 4
      %v2510 = vsel %vm362, %v2500, %v2508
      %v2511 = vsel %vm362, %v2502, %v2509
      %2514 = vst [vmem:[%s231] sm:$0xff] %v2510
      %2515 = vst [vmem:[%s231 + $0x8] sm:$0xff] %v2511
      %v2516 = vrot.slane %v2370, 7
      %v2517 = vsel %vm2406, %v2516, %v2369
      %v2518 = vrot.slane %v2371, 6
      %v2519 = vsel %vm2409, %v2518, %v2517
      %v2520 = vrot.slane %v2372, 5
      %v2521 = vsel %vm2412, %v2520, %v2519
      %v2522 = vrot.slane %v2373, 4
      %vm2523 = vcmask 1044484
      %v2524 = vsel %vm2523, %v2522, %v2521
      %v2525 = vrot.slane %v2374, 3
      %vm2526 = vcmask 1045509
      %v2527 = vsel %vm2526, %v2525, %v2524
      %v2528 = vrot.slane %v2375, 2
      %vm2529 = vcmask 1046534
      %v2530 = vsel %vm2529, %v2528, %v2527
      %v2531 = vrot.slane %v2376, 1
      %vm2532 = vcmask 1047559
      %v2533 = vsel %vm2532, %v2531, %v2530
      %v2534 = vsel %vm2406, %v2419, %v2377
      %v2535 = vrot.slane %v2379, 6
      %v2536 = vsel %vm2409, %v2535, %v2534
      %v2537 = vrot.slane %v2380, 5
      %v2538 = vsel %vm2412, %v2537, %v2536
      %v2539 = vrot.slane %v2381, 4
      %v2540 = vsel %vm2523, %v2539, %v2538
      %v2541 = vrot.slane %v2382, 3
      %v2542 = vsel %vm2526, %v2541, %v2540
      %v2543 = vrot.slane %v2383, 2
      %v2544 = vsel %vm2529, %v2543, %v2542
      %v2545 = vrot.slane %v2384, 1
      %v2546 = vsel %vm2532, %v2545, %v2544
      %v2547 = vrot.slane %v2386, 7
      %v2548 = vsel %vm2406, %v2547, %v2385
      %v2549 = vsel %vm2409, %v2434, %v2548
      %v2550 = vrot.slane %v2388, 5
      %v2551 = vsel %vm2412, %v2550, %v2549
      %v2552 = vrot.slane %v2389, 4
      %v2553 = vsel %vm2523, %v2552, %v2551
      %v2554 = vrot.slane %v2390, 3
      %v2555 = vsel %vm2526, %v2554, %v2553
      %v2556 = vrot.slane %v2391, 2
      %v2557 = vsel %vm2529, %v2556, %v2555
      %v2558 = vrot.slane %v2392, 1
      %v2559 = vsel %vm2532, %v2558, %v2557
      %v2560 = vrot.slane %v2394, 7
      %v2561 = vsel %vm2406, %v2560, %v2393
      %v2562 = vrot.slane %v2395, 6
      %v2563 = vsel %vm2409, %v2562, %v2561
      %v2564 = vsel %vm2412, %v2447, %v2563
      %v2565 = vrot.slane %v2397, 4
      %v2566 = vsel %vm2523, %v2565, %v2564
      %v2567 = vrot.slane %v2398, 3
      %v2568 = vsel %vm2526, %v2567, %v2566
      %v2569 = vrot.slane %v2399, 2
      %v2570 = vsel %vm2529, %v2569, %v2568
      %v2571 = vrot.slane %v2400, 1
      %v2572 = vsel %vm2532, %v2571, %v2570
      %v2577 = vsel %vm2236, %v2533, 0.0
      %v2578 = vsel %vm2236, %v2546, 0.0
      %v2579 = vadd.f32 %v2577, %v2578
      %v2580 = vsel %vm2236, %v2559, 0.0
      %v2581 = vadd.f32 %v2579, %v2580
      %v2582 = vsel %vm2236, %v2572, 0.0
      %v2583 = vadd.f32 %v2581, %v2582
      %v2584 = vrot.slane %v2583, 4
      %v2585 = vadd.f32 %v2583, %v2584
      %v2586 = vrot.slane %v2585, 2
      %v2587 = vadd.f32 %v2585, %v2586
      %v2588 = vrot.slane %v2587, 1
      %v2589 = vadd.f32 %v2587, %v2588
      %v2590 = vmul.f32 %v2369, %v2369
      %v2591 = vmul.f32 %v2370, %v2370
      %v2592 = vmul.f32 %v2371, %v2371
      %v2593 = vmul.f32 %v2372, %v2372
      %v2594 = vmul.f32 %v2373, %v2373
      %v2595 = vmul.f32 %v2374, %v2374
      %v2596 = vmul.f32 %v2375, %v2375
      %v2597 = vmul.f32 %v2376, %v2376
      %v2598 = vmul.f32 %v2377, %v2377
      %v2599 = vmul.f32 %v2378, %v2378
      %v2600 = vmul.f32 %v2379, %v2379
      %v2601 = vmul.f32 %v2380, %v2380
      %v2602 = vmul.f32 %v2381, %v2381
      %v2603 = vmul.f32 %v2382, %v2382
      %v2604 = vmul.f32 %v2383, %v2383
      %v2605 = vmul.f32 %v2384, %v2384
      %v2606 = vmul.f32 %v2385, %v2385
      %v2607 = vmul.f32 %v2386, %v2386
      %v2608 = vmul.f32 %v2387, %v2387
      %v2609 = vmul.f32 %v2388, %v2388
      %v2610 = vmul.f32 %v2389, %v2389
      %v2611 = vmul.f32 %v2390, %v2390
      %v2612 = vmul.f32 %v2391, %v2391
      %v2613 = vmul.f32 %v2392, %v2392
      %v2614 = vmul.f32 %v2393, %v2393
      %v2615 = vmul.f32 %v2394, %v2394
      %v2616 = vmul.f32 %v2395, %v2395
      %v2617 = vmul.f32 %v2396, %v2396
      %v2618 = vmul.f32 %v2397, %v2397
      %v2619 = vmul.f32 %v2398, %v2398
      %v2620 = vmul.f32 %v2399, %v2399
      %v2621 = vmul.f32 %v2400, %v2400
      %v2654 = vrot.slane %v2591, 7
      %v2655 = vsel %vm2406, %v2654, %v2590
      %v2656 = vrot.slane %v2592, 6
      %v2657 = vsel %vm2409, %v2656, %v2655
      %v2658 = vrot.slane %v2593, 5
      %v2659 = vsel %vm2412, %v2658, %v2657
      %v2660 = vrot.slane %v2594, 4
      %v2661 = vsel %vm2523, %v2660, %v2659
      %v2662 = vrot.slane %v2595, 3
      %v2663 = vsel %vm2526, %v2662, %v2661
      %v2664 = vrot.slane %v2596, 2
      %v2665 = vsel %vm2529, %v2664, %v2663
      %v2666 = vrot.slane %v2597, 1
      %v2667 = vsel %vm2532, %v2666, %v2665
      %v2668 = vrot.slane %v2599, 7
      %v2669 = vsel %vm2406, %v2668, %v2598
      %v2670 = vrot.slane %v2600, 6
      %v2671 = vsel %vm2409, %v2670, %v2669
      %v2672 = vrot.slane %v2601, 5
      %v2673 = vsel %vm2412, %v2672, %v2671
      %v2674 = vrot.slane %v2602, 4
      %v2675 = vsel %vm2523, %v2674, %v2673
      %v2676 = vrot.slane %v2603, 3
      %v2677 = vsel %vm2526, %v2676, %v2675
      %v2678 = vrot.slane %v2604, 2
      %v2679 = vsel %vm2529, %v2678, %v2677
      %v2680 = vrot.slane %v2605, 1
      %v2681 = vsel %vm2532, %v2680, %v2679
      %v2682 = vrot.slane %v2607, 7
      %v2683 = vsel %vm2406, %v2682, %v2606
      %v2684 = vrot.slane %v2608, 6
      %v2685 = vsel %vm2409, %v2684, %v2683
      %v2686 = vrot.slane %v2609, 5
      %v2687 = vsel %vm2412, %v2686, %v2685
      %v2688 = vrot.slane %v2610, 4
      %v2689 = vsel %vm2523, %v2688, %v2687
      %v2690 = vrot.slane %v2611, 3
      %v2691 = vsel %vm2526, %v2690, %v2689
      %v2692 = vrot.slane %v2612, 2
      %v2693 = vsel %vm2529, %v2692, %v2691
      %v2694 = vrot.slane %v2613, 1
      %v2695 = vsel %vm2532, %v2694, %v2693
      %v2696 = vrot.slane %v2615, 7
      %v2697 = vsel %vm2406, %v2696, %v2614
      %v2698 = vrot.slane %v2616, 6
      %v2699 = vsel %vm2409, %v2698, %v2697
      %v2700 = vrot.slane %v2617, 5
      %v2701 = vsel %vm2412, %v2700, %v2699
      %v2702 = vrot.slane %v2618, 4
      %v2703 = vsel %vm2523, %v2702, %v2701
      %v2704 = vrot.slane %v2619, 3
      %v2705 = vsel %vm2526, %v2704, %v2703
      %v2706 = vrot.slane %v2620, 2
      %v2707 = vsel %vm2529, %v2706, %v2705
      %v2708 = vrot.slane %v2621, 1
      %v2709 = vsel %vm2532, %v2708, %v2707
      %v2714 = vsel %vm2236, %v2667, 0.0
      %v2715 = vsel %vm2236, %v2681, 0.0
      %v2716 = vadd.f32 %v2714, %v2715
      %v2717 = vsel %vm2236, %v2695, 0.0
      %v2718 = vadd.f32 %v2716, %v2717
      %v2719 = vsel %vm2236, %v2709, 0.0
      %v2720 = vadd.f32 %v2718, %v2719
      %v2721 = vrot.slane %v2720, 4
      %v2722 = vadd.f32 %v2720, %v2721
      %v2723 = vrot.slane %v2722, 2
      %v2724 = vadd.f32 %v2722, %v2723
      %v2725 = vrot.slane %v2724, 1
      %v2726 = vadd.f32 %v2724, %v2725
      %2728 = vrot.lane.b32.xlu0 %v2726, 64
      %v2729 = vpop.permute.xlu0 %2728
      %v2731 = vsel %vm2236, %v2589, %v2729
      %2732 = vst [vmem:[%s238] sm:$0x1] %v2731
      %p2733 = scmp.lt.s32.totalorder %s20, 1
      %s2734 = scalar_select %p2733, %s20, 1
      %p2735 = scmp.lt.s32.totalorder %s21, 1
      %s2736 = scalar_select %p2735, %s21, 1
      %s2737 = smul.addr %s2736, 4
      %s2738 = smul.addr %s2734, 8
      %s2739 = sadd.s32 %s2737, %s2738
      %s2740 = smul.addr %s2739, 4
      %s2741 = scalar_lea.vmem %s3, %s2740
      %p2742 = scmp.lt.s32.totalorder %s20, 1
      %s2743 = scalar_select %p2742, %s20, 1
      %p2744 = scmp.lt.s32.totalorder %s21, 1
      %s2745 = scalar_select %p2744, %s21, 1
      %s2746 = smul.addr %s2743, 2
      %s2747 = sadd.s32 %s2745, %s2746
      %s2748 = scalar_lea.vmem %s4, %s2747
      // Predicated region
      $region33: #{conv3d_block.1} parent=31 // pred_check
        %p2749 = pneg %p116
      $region34: #{conv3d_block.1} parent=31 // pred_check_branch
        %2751 = sbr.rel (%p2749) target = $region36
      $region35: #{conv3d_block.1} parent=31 // pred_region
        _
      $region36: #{conv3d_block.1} parent=31 // pred_fallthru
        _
      // Predicated region
      $region37: #{conv3d_block.1} parent=31 // pred_check
        %p2752 = pneg %p144
      $region38: #{conv3d_block.1} parent=31 // pred_check_branch
        %2754 = sbr.rel (%p2752) target = $region40
      $region39: #{conv3d_block.1} parent=31 // pred_region
        _
      $region40: #{conv3d_block.1} parent=31 // pred_fallthru
        _
    $region32: #{conv3d_block.1} parent=5 // pred_fallthru
      _
    %p2755 = scmp.le.s32.totalorder 2, %s11
    // Predicated region
    $region41: #{conv3d_block.1} parent=5 // pred_check
      %p2756 = pneg %p2755
    $region42: #{conv3d_block.1} parent=5 // pred_check_branch
      %2758 = sbr.rel (%p2756) target = $region44
    $region43: #{conv3d_block.1} parent=5 // pred_region
      %s2759 = ssub.s32 %s11, 2
      // Predicated region
      $region45: #{conv3d_block.1} parent=43 // pred_check
        %p2760 = pneg %p122
      $region46: #{conv3d_block.1} parent=43 // pred_check_branch
        %2762 = sbr.rel (%p2760) target = $region48
      $region47: #{conv3d_block.1} parent=43 // pred_region
        %p2763 = scmp.lt.s32.totalorder %s22, 1
        %s2764 = scalar_select %p2763, %s22, 1
        %p2765 = scmp.lt.s32.totalorder %s23, 1
        %s2766 = scalar_select %p2765, %s23, 1
        %s2767 = smul.addr %s2766, 4
        %s2768 = smul.addr %s2764, 8
        %s2769 = sadd.s32 %s2767, %s2768
        %s2770 = smul.addr %s2769, 4
        %s2771 = scalar_lea.vmem %s3, %s2770
      $region48: #{conv3d_block.1} parent=43 // pred_fallthru
        _
      // Predicated region
      $region49: #{conv3d_block.1} parent=43 // pred_check
        %p2772 = pneg %p150
      $region50: #{conv3d_block.1} parent=43 // pred_check_branch
        %2774 = sbr.rel (%p2772) target = $region52
      $region51: #{conv3d_block.1} parent=43 // pred_region
        %p2775 = scmp.lt.s32.totalorder %s22, 1
        %s2776 = scalar_select %p2775, %s22, 1
        %p2777 = scmp.lt.s32.totalorder %s23, 1
        %s2778 = scalar_select %p2777, %s23, 1
        %s2779 = smul.addr %s2776, 2
        %s2780 = sadd.s32 %s2778, %s2779
        %s2781 = scalar_lea.vmem %s4, %s2780
      $region52: #{conv3d_block.1} parent=43 // pred_fallthru
        _
    $region44: #{conv3d_block.1} parent=5 // pred_fallthru
      _
  $region6: #{conv3d_block.1} parent=0 // loop_footer
    %s15 = sadd.s32 1, %s11
  $region7: #{conv3d_block.1} parent=0 // loop_footer_branch
    %10 = sbr.rel target = $region3
  $region8: #{conv3d_block.1} parent=0 // loop_exit
    _

</llo_original>
